<compile_context>
chip_gen: v6e
topology: v6e:2x2x1
jax: 0.10.0
libtpu: 0.0.40
codegen_flags: <defaults>
</compile_context>

<pallas_src>
import functools

import jax
import jax.numpy as jnp
from jax.experimental import pallas as pl
from jax.experimental.pallas import tpu as pltpu


def _spatial_attention_kernel(x_ref, w_ref, b_ref, o_ref, pad_ref, *, ksize, pad):
    # x_ref:   (1, C, H, W)            one image, NCHW, VMEM
    # w_ref:   (2*ksize*ksize,)        flattened conv weight (c, kh, kw), SMEM
    # b_ref:   (1,)                    conv bias, SMEM
    # o_ref:   (1, H, W)               attention map (channel dim added outside)
    # pad_ref: (2, H+2p, W+2p)         zero-padded [avg, max] planes, VMEM scratch
    _, C, H, W = x_ref.shape

    # ---- channel pooling (mean & max over C) in a single pass over the input ----
    x0 = x_ref[0, 0]                       # (H, W)
    s = x0
    m = x0
    for c in range(1, C):                  # static unroll; C known at trace time
        xc = x_ref[0, c]
        s = s + xc
        m = jnp.maximum(m, xc)
    avg = s * (1.0 / C)

    # ---- build the zero-padded 2-channel map in VMEM scratch ----
    pad_ref[...] = jnp.zeros_like(pad_ref)
    pad_ref[0, pad:pad + H, pad:pad + W] = avg
    pad_ref[1, pad:pad + H, pad:pad + W] = m

    # ---- 7x7, 2->1 channel conv as shifted-window scalar FMAs (VPU) ----
    acc = jnp.zeros((H, W), dtype=jnp.float32)
    for c in range(2):
        base = c * ksize * ksize
        for kh in range(ksize):
            for kw in range(ksize):
                wgt = w_ref[base + kh * ksize + kw]            # SMEM scalar
                acc = acc + wgt * pad_ref[c, kh:kh + H, kw:kw + W]
    acc = acc + b_ref[0]

    # ---- sigmoid (exp goes to the EUP; divide on VPU) ----
    o_ref[0] = 1.0 / (1.0 + jnp.exp(-acc))


def spatial_attention(x_nchw, weight_oihw, bias):
    """SpatialAttention forward. x_nchw: (N, C, H, W) f32 -> (N, 1, H, W)."""
    N, C, H, W = x_nchw.shape
    cout, cin, KH, KW = weight_oihw.shape
    assert cout == 1 and cin == 2 and KH == KW
    ksize = KH
    pad = ksize // 2
    Hp, Wp = H + 2 * pad, W + 2 * pad

    # Weight/bias flattened once into SMEM-friendly 1-D arrays (model-init cost).
    w_flat = weight_oihw.reshape(-1).astype(jnp.float32)     # (2*k*k,)
    b_flat = bias.reshape(1).astype(jnp.float32)             # (1,)

    kernel = functools.partial(_spatial_attention_kernel, ksize=ksize, pad=pad)

    out = pl.pallas_call(
        kernel,
        out_shape=jax.ShapeDtypeStruct((N, H, W), jnp.float32),
        grid=(N,),
        in_specs=[
            pl.BlockSpec((1, C, H, W), lambda n: (n, 0, 0, 0)),
            pl.BlockSpec(memory_space=pltpu.MemorySpace.SMEM),
            pl.BlockSpec(memory_space=pltpu.MemorySpace.SMEM),
        ],
        out_specs=pl.BlockSpec((1, H, W), lambda n: (n, 0, 0)),
        scratch_shapes=[pltpu.VMEM((2, Hp, Wp), jnp.float32)],
        compiler_params=pltpu.CompilerParams(
            dimension_semantics=("parallel",)),
    )(x_nchw.astype(jnp.float32), w_flat, b_flat)

    # Restore the PyTorch (N, 1, H, W) convention outside the kernel.
    return out.reshape(N, 1, H, W)


if __name__ == "__main__":
    key = jax.random.PRNGKey(0)
    k_x, k_w, k_b = jax.random.split(key, 3)

    N, C, H, W = 2, 4, 16, 16
    ksize = 7

    x = jax.random.normal(k_x, (N, C, H, W), dtype=jnp.float32)
    # Conv2d(2, 1, 7, padding=3) weight (OIHW) and bias.
    weight = jax.random.normal(k_w, (1, 2, ksize, ksize), dtype=jnp.float32) * 0.1
    bias = 0.1 * jax.random.normal(k_b, (1,), dtype=jnp.float32)

    out = spatial_attention(x, weight, bias)
    jax.block_until_ready(out)
    assert out.shape == (N, 1, H, W)

    # Pure-JAX reference matching the PyTorch forward.
    pooled = jnp.concatenate(
        [jnp.mean(x, axis=1, keepdims=True), jnp.max(x, axis=1, keepdims=True)],
        axis=1)
    ref = jax.lax.conv_general_dilated(
        pooled, weight, window_strides=(1, 1),
        padding=((ksize // 2,) * 2, (ksize // 2,) * 2),
        dimension_numbers=("NCHW", "OIHW", "NCHW")) + bias.reshape(1, 1, 1, 1)
    ref = jax.nn.sigmoid(ref)
    assert jnp.allclose(out, ref, atol=1e-5), float(jnp.max(jnp.abs(out - ref)))

    print("KERNEL_OK")
</pallas_src>

<mosaic_0001>
module attributes {stable_mosaic.version = 11 : i64} {
  func.func @_spatial_attention_kernel(%arg0: i32, %arg1: memref<1x4x16x16xf32, #tpu.memory_space<vmem>>, %arg2: memref<98xf32, #tpu.memory_space<smem>>, %arg3: memref<1xf32, #tpu.memory_space<smem>>, %arg4: memref<1x16x16xf32, #tpu.memory_space<vmem>>, %arg5: memref<2x22x22xf32, #tpu.memory_space<vmem>>) attributes {dimension_semantics = [#tpu.dimension_semantics<parallel>], iteration_bounds = array<i64: 2>, scalar_prefetch = 0 : i64, scratch_operands = 1 : i64, tpu.core_type = #tpu.core_type<tc>, window_params = [{transform_indices = @transform_0, window_bounds = array<i64: 1, 4, 16, 16>}, {transform_indices = @transform_1, window_bounds = array<i64: 98>}, {transform_indices = @transform_2, window_bounds = array<i64: 1>}, {transform_indices = @transform_3, window_bounds = array<i64: 1, 16, 16>}]} {
    %c0 = arith.constant 0 : index
    %c0_0 = arith.constant 0 : index
    %c0_1 = arith.constant 0 : index
    %c0_2 = arith.constant 0 : index
    %0 = vector.load %arg1[%c0, %c0_0, %c0_1, %c0_2] : memref<1x4x16x16xf32, #tpu.memory_space<vmem>>, vector<1x1x16x16xf32>
    %1 = vector.shape_cast %0 : vector<1x1x16x16xf32> to vector<16x16xf32>
    %c0_3 = arith.constant 0 : index
    %c1 = arith.constant 1 : index
    %c0_4 = arith.constant 0 : index
    %c0_5 = arith.constant 0 : index
    %2 = vector.load %arg1[%c0_3, %c1, %c0_4, %c0_5] : memref<1x4x16x16xf32, #tpu.memory_space<vmem>>, vector<1x1x16x16xf32>
    %3 = vector.shape_cast %2 : vector<1x1x16x16xf32> to vector<16x16xf32>
    %4 = arith.addf %1, %3 : vector<16x16xf32>
    %5 = arith.maximumf %1, %3 : vector<16x16xf32>
    %c0_6 = arith.constant 0 : index
    %c2 = arith.constant 2 : index
    %c0_7 = arith.constant 0 : index
    %c0_8 = arith.constant 0 : index
    %6 = vector.load %arg1[%c0_6, %c2, %c0_7, %c0_8] : memref<1x4x16x16xf32, #tpu.memory_space<vmem>>, vector<1x1x16x16xf32>
    %7 = vector.shape_cast %6 : vector<1x1x16x16xf32> to vector<16x16xf32>
    %8 = arith.addf %4, %7 : vector<16x16xf32>
    %9 = arith.maximumf %5, %7 : vector<16x16xf32>
    %c0_9 = arith.constant 0 : index
    %c3 = arith.constant 3 : index
    %c0_10 = arith.constant 0 : index
    %c0_11 = arith.constant 0 : index
    %10 = vector.load %arg1[%c0_9, %c3, %c0_10, %c0_11] : memref<1x4x16x16xf32, #tpu.memory_space<vmem>>, vector<1x1x16x16xf32>
    %11 = vector.shape_cast %10 : vector<1x1x16x16xf32> to vector<16x16xf32>
    %12 = arith.addf %8, %11 : vector<16x16xf32>
    %13 = arith.maximumf %9, %11 : vector<16x16xf32>
    %cst = arith.constant 2.500000e-01 : f32
    %14 = vector.broadcast %cst : f32 to vector<16x16xf32>
    %15 = arith.mulf %12, %14 : vector<16x16xf32>
    %cst_12 = arith.constant 0.000000e+00 : f32
    %16 = vector.broadcast %cst_12 : f32 to vector<2x22x22xf32>
    %c0_13 = arith.constant 0 : index
    %c0_14 = arith.constant 0 : index
    %c0_15 = arith.constant 0 : index
    %17 = vector.load %arg5[%c0_13, %c0_14, %c0_15] : memref<2x22x22xf32, #tpu.memory_space<vmem>>, vector<2x22x22xf32>
    tpu.vector_store %arg5[%c0_13, %c0_14, %c0_15], %16 {strides = array<i32>} : memref<2x22x22xf32, #tpu.memory_space<vmem>>, vector<2x22x22xf32>,
    %c0_16 = arith.constant 0 : index
    %c3_17 = arith.constant 3 : index
    %c3_18 = arith.constant 3 : index
    %18 = vector.load %arg5[%c0_16, %c3_17, %c3_18] : memref<2x22x22xf32, #tpu.memory_space<vmem>>, vector<1x16x16xf32>
    %19 = vector.shape_cast %18 : vector<1x16x16xf32> to vector<16x16xf32>
    %20 = vector.shape_cast %15 : vector<16x16xf32> to vector<1x16x16xf32>
    tpu.vector_store %arg5[%c0_16, %c3_17, %c3_18], %20 {strides = array<i32>} : memref<2x22x22xf32, #tpu.memory_space<vmem>>, vector<1x16x16xf32>,
    %c1_19 = arith.constant 1 : index
    %c3_20 = arith.constant 3 : index
    %c3_21 = arith.constant 3 : index
    %21 = vector.load %arg5[%c1_19, %c3_20, %c3_21] : memref<2x22x22xf32, #tpu.memory_space<vmem>>, vector<1x16x16xf32>
    %22 = vector.shape_cast %21 : vector<1x16x16xf32> to vector<16x16xf32>
    %23 = vector.shape_cast %13 : vector<16x16xf32> to vector<1x16x16xf32>
    tpu.vector_store %arg5[%c1_19, %c3_20, %c3_21], %23 {strides = array<i32>} : memref<2x22x22xf32, #tpu.memory_space<vmem>>, vector<1x16x16xf32>,
    %cst_22 = arith.constant 0.000000e+00 : f32
    %24 = vector.broadcast %cst_22 : f32 to vector<16x16xf32>
    %c0_23 = arith.constant 0 : index
    %25 = memref.load %arg2[%c0_23] : memref<98xf32, #tpu.memory_space<smem>>
    %c0_24 = arith.constant 0 : index
    %c0_25 = arith.constant 0 : index
    %c0_26 = arith.constant 0 : index
    %26 = vector.load %arg5[%c0_24, %c0_25, %c0_26] : memref<2x22x22xf32, #tpu.memory_space<vmem>>, vector<1x16x16xf32>
    %27 = vector.shape_cast %26 : vector<1x16x16xf32> to vector<16x16xf32>
    %28 = vector.broadcast %25 : f32 to vector<16x16xf32>
    %29 = arith.mulf %28, %27 : vector<16x16xf32>
    %30 = arith.addf %24, %29 : vector<16x16xf32>
    %c1_27 = arith.constant 1 : index
    %31 = memref.load %arg2[%c1_27] : memref<98xf32, #tpu.memory_space<smem>>
    %c0_28 = arith.constant 0 : index
    %c0_29 = arith.constant 0 : index
    %c1_30 = arith.constant 1 : index
    %32 = vector.load %arg5[%c0_28, %c0_29, %c1_30] : memref<2x22x22xf32, #tpu.memory_space<vmem>>, vector<1x16x16xf32>
    %33 = vector.shape_cast %32 : vector<1x16x16xf32> to vector<16x16xf32>
    %34 = vector.broadcast %31 : f32 to vector<16x16xf32>
    %35 = arith.mulf %34, %33 : vector<16x16xf32>
    %36 = arith.addf %30, %35 : vector<16x16xf32>
    %c2_31 = arith.constant 2 : index
    %37 = memref.load %arg2[%c2_31] : memref<98xf32, #tpu.memory_space<smem>>
    %c0_32 = arith.constant 0 : index
    %c0_33 = arith.constant 0 : index
    %c2_34 = arith.constant 2 : index
    %38 = vector.load %arg5[%c0_32, %c0_33, %c2_34] : memref<2x22x22xf32, #tpu.memory_space<vmem>>, vector<1x16x16xf32>
    %39 = vector.shape_cast %38 : vector<1x16x16xf32> to vector<16x16xf32>
    %40 = vector.broadcast %37 : f32 to vector<16x16xf32>
    %41 = arith.mulf %40, %39 : vector<16x16xf32>
    %42 = arith.addf %36, %41 : vector<16x16xf32>
    %c3_35 = arith.constant 3 : index
    %43 = memref.load %arg2[%c3_35] : memref<98xf32, #tpu.memory_space<smem>>
    %c0_36 = arith.constant 0 : index
    %c0_37 = arith.constant 0 : index
    %c3_38 = arith.constant 3 : index
    %44 = vector.load %arg5[%c0_36, %c0_37, %c3_38] : memref<2x22x22xf32, #tpu.memory_space<vmem>>, vector<1x16x16xf32>
    %45 = vector.shape_cast %44 : vector<1x16x16xf32> to vector<16x16xf32>
    %46 = vector.broadcast %43 : f32 to vector<16x16xf32>
    %47 = arith.mulf %46, %45 : vector<16x16xf32>
    %48 = arith.addf %42, %47 : vector<16x16xf32>
    %c4 = arith.constant 4 : index
    %49 = memref.load %arg2[%c4] : memref<98xf32, #tpu.memory_space<smem>>
    %c0_39 = arith.constant 0 : index
    %c0_40 = arith.constant 0 : index
    %c4_41 = arith.constant 4 : index
    %50 = vector.load %arg5[%c0_39, %c0_40, %c4_41] : memref<2x22x22xf32, #tpu.memory_space<vmem>>, vector<1x16x16xf32>
    %51 = vector.shape_cast %50 : vector<1x16x16xf32> to vector<16x16xf32>
    %52 = vector.broadcast %49 : f32 to vector<16x16xf32>
    %53 = arith.mulf %52, %51 : vector<16x16xf32>
    %54 = arith.addf %48, %53 : vector<16x16xf32>
    %c5 = arith.constant 5 : index
    %55 = memref.load %arg2[%c5] : memref<98xf32, #tpu.memory_space<smem>>
    %c0_42 = arith.constant 0 : index
    %c0_43 = arith.constant 0 : index
    %c5_44 = arith.constant 5 : index
    %56 = vector.load %arg5[%c0_42, %c0_43, %c5_44] : memref<2x22x22xf32, #tpu.memory_space<vmem>>, vector<1x16x16xf32>
    %57 = vector.shape_cast %56 : vector<1x16x16xf32> to vector<16x16xf32>
    %58 = vector.broadcast %55 : f32 to vector<16x16xf32>
    %59 = arith.mulf %58, %57 : vector<16x16xf32>
    %60 = arith.addf %54, %59 : vector<16x16xf32>
    %c6 = arith.constant 6 : index
    %61 = memref.load %arg2[%c6] : memref<98xf32, #tpu.memory_space<smem>>
    %c0_45 = arith.constant 0 : index
    %c0_46 = arith.constant 0 : index
    %c6_47 = arith.constant 6 : index
    %62 = vector.load %arg5[%c0_45, %c0_46, %c6_47] : memref<2x22x22xf32, #tpu.memory_space<vmem>>, vector<1x16x16xf32>
    %63 = vector.shape_cast %62 : vector<1x16x16xf32> to vector<16x16xf32>
    %64 = vector.broadcast %61 : f32 to vector<16x16xf32>
    %65 = arith.mulf %64, %63 : vector<16x16xf32>
    %66 = arith.addf %60, %65 : vector<16x16xf32>
    %c7 = arith.constant 7 : index
    %67 = memref.load %arg2[%c7] : memref<98xf32, #tpu.memory_space<smem>>
    %c0_48 = arith.constant 0 : index
    %c1_49 = arith.constant 1 : index
    %c0_50 = arith.constant 0 : index
    %68 = vector.load %arg5[%c0_48, %c1_49, %c0_50] : memref<2x22x22xf32, #tpu.memory_space<vmem>>, vector<1x16x16xf32>
    %69 = vector.shape_cast %68 : vector<1x16x16xf32> to vector<16x16xf32>
    %70 = vector.broadcast %67 : f32 to vector<16x16xf32>
    %71 = arith.mulf %70, %69 : vector<16x16xf32>
    %72 = arith.addf %66, %71 : vector<16x16xf32>
    %c8 = arith.constant 8 : index
    %73 = memref.load %arg2[%c8] : memref<98xf32, #tpu.memory_space<smem>>
    %c0_51 = arith.constant 0 : index
    %c1_52 = arith.constant 1 : index
    %c1_53 = arith.constant 1 : index
    %74 = vector.load %arg5[%c0_51, %c1_52, %c1_53] : memref<2x22x22xf32, #tpu.memory_space<vmem>>, vector<1x16x16xf32>
    %75 = vector.shape_cast %74 : vector<1x16x16xf32> to vector<16x16xf32>
    %76 = vector.broadcast %73 : f32 to vector<16x16xf32>
    %77 = arith.mulf %76, %75 : vector<16x16xf32>
    %78 = arith.addf %72, %77 : vector<16x16xf32>
    %c9 = arith.constant 9 : index
    %79 = memref.load %arg2[%c9] : memref<98xf32, #tpu.memory_space<smem>>
    %c0_54 = arith.constant 0 : index
    %c1_55 = arith.constant 1 : index
    %c2_56 = arith.constant 2 : index
    %80 = vector.load %arg5[%c0_54, %c1_55, %c2_56] : memref<2x22x22xf32, #tpu.memory_space<vmem>>, vector<1x16x16xf32>
    %81 = vector.shape_cast %80 : vector<1x16x16xf32> to vector<16x16xf32>
    %82 = vector.broadcast %79 : f32 to vector<16x16xf32>
    %83 = arith.mulf %82, %81 : vector<16x16xf32>
    %84 = arith.addf %78, %83 : vector<16x16xf32>
    %c10 = arith.constant 10 : index
    %85 = memref.load %arg2[%c10] : memref<98xf32, #tpu.memory_space<smem>>
    %c0_57 = arith.constant 0 : index
    %c1_58 = arith.constant 1 : index
    %c3_59 = arith.constant 3 : index
    %86 = vector.load %arg5[%c0_57, %c1_58, %c3_59] : memref<2x22x22xf32, #tpu.memory_space<vmem>>, vector<1x16x16xf32>
    %87 = vector.shape_cast %86 : vector<1x16x16xf32> to vector<16x16xf32>
    %88 = vector.broadcast %85 : f32 to vector<16x16xf32>
    %89 = arith.mulf %88, %87 : vector<16x16xf32>
    %90 = arith.addf %84, %89 : vector<16x16xf32>
    %c11 = arith.constant 11 : index
    %91 = memref.load %arg2[%c11] : memref<98xf32, #tpu.memory_space<smem>>
    %c0_60 = arith.constant 0 : index
    %c1_61 = arith.constant 1 : index
    %c4_62 = arith.constant 4 : index
    %92 = vector.load %arg5[%c0_60, %c1_61, %c4_62] : memref<2x22x22xf32, #tpu.memory_space<vmem>>, vector<1x16x16xf32>
    %93 = vector.shape_cast %92 : vector<1x16x16xf32> to vector<16x16xf32>
    %94 = vector.broadcast %91 : f32 to vector<16x16xf32>
    %95 = arith.mulf %94, %93 : vector<16x16xf32>
    %96 = arith.addf %90, %95 : vector<16x16xf32>
    %c12 = arith.constant 12 : index
    %97 = memref.load %arg2[%c12] : memref<98xf32, #tpu.memory_space<smem>>
    %c0_63 = arith.constant 0 : index
    %c1_64 = arith.constant 1 : index
    %c5_65 = arith.constant 5 : index
    %98 = vector.load %arg5[%c0_63, %c1_64, %c5_65] : memref<2x22x22xf32, #tpu.memory_space<vmem>>, vector<1x16x16xf32>
    %99 = vector.shape_cast %98 : vector<1x16x16xf32> to vector<16x16xf32>
    %100 = vector.broadcast %97 : f32 to vector<16x16xf32>
    %101 = arith.mulf %100, %99 : vector<16x16xf32>
    %102 = arith.addf %96, %101 : vector<16x16xf32>
    %c13 = arith.constant 13 : index
    %103 = memref.load %arg2[%c13] : memref<98xf32, #tpu.memory_space<smem>>
    %c0_66 = arith.constant 0 : index
    %c1_67 = arith.constant 1 : index
    %c6_68 = arith.constant 6 : index
    %104 = vector.load %arg5[%c0_66, %c1_67, %c6_68] : memref<2x22x22xf32, #tpu.memory_space<vmem>>, vector<1x16x16xf32>
    %105 = vector.shape_cast %104 : vector<1x16x16xf32> to vector<16x16xf32>
    %106 = vector.broadcast %103 : f32 to vector<16x16xf32>
    %107 = arith.mulf %106, %105 : vector<16x16xf32>
    %108 = arith.addf %102, %107 : vector<16x16xf32>
    %c14 = arith.constant 14 : index
    %109 = memref.load %arg2[%c14] : memref<98xf32, #tpu.memory_space<smem>>
    %c0_69 = arith.constant 0 : index
    %c2_70 = arith.constant 2 : index
    %c0_71 = arith.constant 0 : index
    %110 = vector.load %arg5[%c0_69, %c2_70, %c0_71] : memref<2x22x22xf32, #tpu.memory_space<vmem>>, vector<1x16x16xf32>
    %111 = vector.shape_cast %110 : vector<1x16x16xf32> to vector<16x16xf32>
    %112 = vector.broadcast %109 : f32 to vector<16x16xf32>
    %113 = arith.mulf %112, %111 : vector<16x16xf32>
    %114 = arith.addf %108, %113 : vector<16x16xf32>
    %c15 = arith.constant 15 : index
    %115 = memref.load %arg2[%c15] : memref<98xf32, #tpu.memory_space<smem>>
    %c0_72 = arith.constant 0 : index
    %c2_73 = arith.constant 2 : index
    %c1_74 = arith.constant 1 : index
    %116 = vector.load %arg5[%c0_72, %c2_73, %c1_74] : memref<2x22x22xf32, #tpu.memory_space<vmem>>, vector<1x16x16xf32>
    %117 = vector.shape_cast %116 : vector<1x16x16xf32> to vector<16x16xf32>
    %118 = vector.broadcast %115 : f32 to vector<16x16xf32>
    %119 = arith.mulf %118, %117 : vector<16x16xf32>
    %120 = arith.addf %114, %119 : vector<16x16xf32>
    %c16 = arith.constant 16 : index
    %121 = memref.load %arg2[%c16] : memref<98xf32, #tpu.memory_space<smem>>
    %c0_75 = arith.constant 0 : index
    %c2_76 = arith.constant 2 : index
    %c2_77 = arith.constant 2 : index
    %122 = vector.load %arg5[%c0_75, %c2_76, %c2_77] : memref<2x22x22xf32, #tpu.memory_space<vmem>>, vector<1x16x16xf32>
    %123 = vector.shape_cast %122 : vector<1x16x16xf32> to vector<16x16xf32>
    %124 = vector.broadcast %121 : f32 to vector<16x16xf32>
    %125 = arith.mulf %124, %123 : vector<16x16xf32>
    %126 = arith.addf %120, %125 : vector<16x16xf32>
    %c17 = arith.constant 17 : index
    %127 = memref.load %arg2[%c17] : memref<98xf32, #tpu.memory_space<smem>>
    %c0_78 = arith.constant 0 : index
    %c2_79 = arith.constant 2 : index
    %c3_80 = arith.constant 3 : index
    %128 = vector.load %arg5[%c0_78, %c2_79, %c3_80] : memref<2x22x22xf32, #tpu.memory_space<vmem>>, vector<1x16x16xf32>
    %129 = vector.shape_cast %128 : vector<1x16x16xf32> to vector<16x16xf32>
    %130 = vector.broadcast %127 : f32 to vector<16x16xf32>
    %131 = arith.mulf %130, %129 : vector<16x16xf32>
    %132 = arith.addf %126, %131 : vector<16x16xf32>
    %c18 = arith.constant 18 : index
    %133 = memref.load %arg2[%c18] : memref<98xf32, #tpu.memory_space<smem>>
    %c0_81 = arith.constant 0 : index
    %c2_82 = arith.constant 2 : index
    %c4_83 = arith.constant 4 : index
    %134 = vector.load %arg5[%c0_81, %c2_82, %c4_83] : memref<2x22x22xf32, #tpu.memory_space<vmem>>, vector<1x16x16xf32>
    %135 = vector.shape_cast %134 : vector<1x16x16xf32> to vector<16x16xf32>
    %136 = vector.broadcast %133 : f32 to vector<16x16xf32>
    %137 = arith.mulf %136, %135 : vector<16x16xf32>
    %138 = arith.addf %132, %137 : vector<16x16xf32>
    %c19 = arith.constant 19 : index
    %139 = memref.load %arg2[%c19] : memref<98xf32, #tpu.memory_space<smem>>
    %c0_84 = arith.constant 0 : index
    %c2_85 = arith.constant 2 : index
    %c5_86 = arith.constant 5 : index
    %140 = vector.load %arg5[%c0_84, %c2_85, %c5_86] : memref<2x22x22xf32, #tpu.memory_space<vmem>>, vector<1x16x16xf32>
    %141 = vector.shape_cast %140 : vector<1x16x16xf32> to vector<16x16xf32>
    %142 = vector.broadcast %139 : f32 to vector<16x16xf32>
    %143 = arith.mulf %142, %141 : vector<16x16xf32>
    %144 = arith.addf %138, %143 : vector<16x16xf32>
    %c20 = arith.constant 20 : index
    %145 = memref.load %arg2[%c20] : memref<98xf32, #tpu.memory_space<smem>>
    %c0_87 = arith.constant 0 : index
    %c2_88 = arith.constant 2 : index
    %c6_89 = arith.constant 6 : index
    %146 = vector.load %arg5[%c0_87, %c2_88, %c6_89] : memref<2x22x22xf32, #tpu.memory_space<vmem>>, vector<1x16x16xf32>
    %147 = vector.shape_cast %146 : vector<1x16x16xf32> to vector<16x16xf32>
    %148 = vector.broadcast %145 : f32 to vector<16x16xf32>
    %149 = arith.mulf %148, %147 : vector<16x16xf32>
    %150 = arith.addf %144, %149 : vector<16x16xf32>
    %c21 = arith.constant 21 : index
    %151 = memref.load %arg2[%c21] : memref<98xf32, #tpu.memory_space<smem>>
    %c0_90 = arith.constant 0 : index
    %c3_91 = arith.constant 3 : index
    %c0_92 = arith.constant 0 : index
    %152 = vector.load %arg5[%c0_90, %c3_91, %c0_92] : memref<2x22x22xf32, #tpu.memory_space<vmem>>, vector<1x16x16xf32>
    %153 = vector.shape_cast %152 : vector<1x16x16xf32> to vector<16x16xf32>
    %154 = vector.broadcast %151 : f32 to vector<16x16xf32>
    %155 = arith.mulf %154, %153 : vector<16x16xf32>
    %156 = arith.addf %150, %155 : vector<16x16xf32>
    %c22 = arith.constant 22 : index
    %157 = memref.load %arg2[%c22] : memref<98xf32, #tpu.memory_space<smem>>
    %c0_93 = arith.constant 0 : index
    %c3_94 = arith.constant 3 : index
    %c1_95 = arith.constant 1 : index
    %158 = vector.load %arg5[%c0_93, %c3_94, %c1_95] : memref<2x22x22xf32, #tpu.memory_space<vmem>>, vector<1x16x16xf32>
    %159 = vector.shape_cast %158 : vector<1x16x16xf32> to vector<16x16xf32>
    %160 = vector.broadcast %157 : f32 to vector<16x16xf32>
    %161 = arith.mulf %160, %159 : vector<16x16xf32>
    %162 = arith.addf %156, %161 : vector<16x16xf32>
    %c23 = arith.constant 23 : index
    %163 = memref.load %arg2[%c23] : memref<98xf32, #tpu.memory_space<smem>>
    %c0_96 = arith.constant 0 : index
    %c3_97 = arith.constant 3 : index
    %c2_98 = arith.constant 2 : index
    %164 = vector.load %arg5[%c0_96, %c3_97, %c2_98] : memref<2x22x22xf32, #tpu.memory_space<vmem>>, vector<1x16x16xf32>
    %165 = vector.shape_cast %164 : vector<1x16x16xf32> to vector<16x16xf32>
    %166 = vector.broadcast %163 : f32 to vector<16x16xf32>
    %167 = arith.mulf %166, %165 : vector<16x16xf32>
    %168 = arith.addf %162, %167 : vector<16x16xf32>
    %c24 = arith.constant 24 : index
    %169 = memref.load %arg2[%c24] : memref<98xf32, #tpu.memory_space<smem>>
    %c0_99 = arith.constant 0 : index
    %c3_100 = arith.constant 3 : index
    %c3_101 = arith.constant 3 : index
    %170 = vector.load %arg5[%c0_99, %c3_100, %c3_101] : memref<2x22x22xf32, #tpu.memory_space<vmem>>, vector<1x16x16xf32>
    %171 = vector.shape_cast %170 : vector<1x16x16xf32> to vector<16x16xf32>
    %172 = vector.broadcast %169 : f32 to vector<16x16xf32>
    %173 = arith.mulf %172, %171 : vector<16x16xf32>
    %174 = arith.addf %168, %173 : vector<16x16xf32>
    %c25 = arith.constant 25 : index
    %175 = memref.load %arg2[%c25] : memref<98xf32, #tpu.memory_space<smem>>
    %c0_102 = arith.constant 0 : index
    %c3_103 = arith.constant 3 : index
    %c4_104 = arith.constant 4 : index
    %176 = vector.load %arg5[%c0_102, %c3_103, %c4_104] : memref<2x22x22xf32, #tpu.memory_space<vmem>>, vector<1x16x16xf32>
    %177 = vector.shape_cast %176 : vector<1x16x16xf32> to vector<16x16xf32>
    %178 = vector.broadcast %175 : f32 to vector<16x16xf32>
    %179 = arith.mulf %178, %177 : vector<16x16xf32>
    %180 = arith.addf %174, %179 : vector<16x16xf32>
    %c26 = arith.constant 26 : index
    %181 = memref.load %arg2[%c26] : memref<98xf32, #tpu.memory_space<smem>>
    %c0_105 = arith.constant 0 : index
    %c3_106 = arith.constant 3 : index
    %c5_107 = arith.constant 5 : index
    %182 = vector.load %arg5[%c0_105, %c3_106, %c5_107] : memref<2x22x22xf32, #tpu.memory_space<vmem>>, vector<1x16x16xf32>
    %183 = vector.shape_cast %182 : vector<1x16x16xf32> to vector<16x16xf32>
    %184 = vector.broadcast %181 : f32 to vector<16x16xf32>
    %185 = arith.mulf %184, %183 : vector<16x16xf32>
    %186 = arith.addf %180, %185 : vector<16x16xf32>
    %c27 = arith.constant 27 : index
    %187 = memref.load %arg2[%c27] : memref<98xf32, #tpu.memory_space<smem>>
    %c0_108 = arith.constant 0 : index
    %c3_109 = arith.constant 3 : index
    %c6_110 = arith.constant 6 : index
    %188 = vector.load %arg5[%c0_108, %c3_109, %c6_110] : memref<2x22x22xf32, #tpu.memory_space<vmem>>, vector<1x16x16xf32>
    %189 = vector.shape_cast %188 : vector<1x16x16xf32> to vector<16x16xf32>
    %190 = vector.broadcast %187 : f32 to vector<16x16xf32>
    %191 = arith.mulf %190, %189 : vector<16x16xf32>
    %192 = arith.addf %186, %191 : vector<16x16xf32>
    %c28 = arith.constant 28 : index
    %193 = memref.load %arg2[%c28] : memref<98xf32, #tpu.memory_space<smem>>
    %c0_111 = arith.constant 0 : index
    %c4_112 = arith.constant 4 : index
    %c0_113 = arith.constant 0 : index
    %194 = vector.load %arg5[%c0_111, %c4_112, %c0_113] : memref<2x22x22xf32, #tpu.memory_space<vmem>>, vector<1x16x16xf32>
    %195 = vector.shape_cast %194 : vector<1x16x16xf32> to vector<16x16xf32>
    %196 = vector.broadcast %193 : f32 to vector<16x16xf32>
    %197 = arith.mulf %196, %195 : vector<16x16xf32>
    %198 = arith.addf %192, %197 : vector<16x16xf32>
    %c29 = arith.constant 29 : index
    %199 = memref.load %arg2[%c29] : memref<98xf32, #tpu.memory_space<smem>>
    %c0_114 = arith.constant 0 : index
    %c4_115 = arith.constant 4 : index
    %c1_116 = arith.constant 1 : index
    %200 = vector.load %arg5[%c0_114, %c4_115, %c1_116] : memref<2x22x22xf32, #tpu.memory_space<vmem>>, vector<1x16x16xf32>
    %201 = vector.shape_cast %200 : vector<1x16x16xf32> to vector<16x16xf32>
    %202 = vector.broadcast %199 : f32 to vector<16x16xf32>
    %203 = arith.mulf %202, %201 : vector<16x16xf32>
    %204 = arith.addf %198, %203 : vector<16x16xf32>
    %c30 = arith.constant 30 : index
    %205 = memref.load %arg2[%c30] : memref<98xf32, #tpu.memory_space<smem>>
    %c0_117 = arith.constant 0 : index
    %c4_118 = arith.constant 4 : index
    %c2_119 = arith.constant 2 : index
    %206 = vector.load %arg5[%c0_117, %c4_118, %c2_119] : memref<2x22x22xf32, #tpu.memory_space<vmem>>, vector<1x16x16xf32>
    %207 = vector.shape_cast %206 : vector<1x16x16xf32> to vector<16x16xf32>
    %208 = vector.broadcast %205 : f32 to vector<16x16xf32>
    %209 = arith.mulf %208, %207 : vector<16x16xf32>
    %210 = arith.addf %204, %209 : vector<16x16xf32>
    %c31 = arith.constant 31 : index
    %211 = memref.load %arg2[%c31] : memref<98xf32, #tpu.memory_space<smem>>
    %c0_120 = arith.constant 0 : index
    %c4_121 = arith.constant 4 : index
    %c3_122 = arith.constant 3 : index
    %212 = vector.load %arg5[%c0_120, %c4_121, %c3_122] : memref<2x22x22xf32, #tpu.memory_space<vmem>>, vector<1x16x16xf32>
    %213 = vector.shape_cast %212 : vector<1x16x16xf32> to vector<16x16xf32>
    %214 = vector.broadcast %211 : f32 to vector<16x16xf32>
    %215 = arith.mulf %214, %213 : vector<16x16xf32>
    %216 = arith.addf %210, %215 : vector<16x16xf32>
    %c32 = arith.constant 32 : index
    %217 = memref.load %arg2[%c32] : memref<98xf32, #tpu.memory_space<smem>>
    %c0_123 = arith.constant 0 : index
    %c4_124 = arith.constant 4 : index
    %c4_125 = arith.constant 4 : index
    %218 = vector.load %arg5[%c0_123, %c4_124, %c4_125] : memref<2x22x22xf32, #tpu.memory_space<vmem>>, vector<1x16x16xf32>
    %219 = vector.shape_cast %218 : vector<1x16x16xf32> to vector<16x16xf32>
    %220 = vector.broadcast %217 : f32 to vector<16x16xf32>
    %221 = arith.mulf %220, %219 : vector<16x16xf32>
    %222 = arith.addf %216, %221 : vector<16x16xf32>
    %c33 = arith.constant 33 : index
    %223 = memref.load %arg2[%c33] : memref<98xf32, #tpu.memory_space<smem>>
    %c0_126 = arith.constant 0 : index
    %c4_127 = arith.constant 4 : index
    %c5_128 = arith.constant 5 : index
    %224 = vector.load %arg5[%c0_126, %c4_127, %c5_128] : memref<2x22x22xf32, #tpu.memory_space<vmem>>, vector<1x16x16xf32>
    %225 = vector.shape_cast %224 : vector<1x16x16xf32> to vector<16x16xf32>
    %226 = vector.broadcast %223 : f32 to vector<16x16xf32>
    %227 = arith.mulf %226, %225 : vector<16x16xf32>
    %228 = arith.addf %222, %227 : vector<16x16xf32>
    %c34 = arith.constant 34 : index
    %229 = memref.load %arg2[%c34] : memref<98xf32, #tpu.memory_space<smem>>
    %c0_129 = arith.constant 0 : index
    %c4_130 = arith.constant 4 : index
    %c6_131 = arith.constant 6 : index
    %230 = vector.load %arg5[%c0_129, %c4_130, %c6_131] : memref<2x22x22xf32, #tpu.memory_space<vmem>>, vector<1x16x16xf32>
    %231 = vector.shape_cast %230 : vector<1x16x16xf32> to vector<16x16xf32>
    %232 = vector.broadcast %229 : f32 to vector<16x16xf32>
    %233 = arith.mulf %232, %231 : vector<16x16xf32>
    %234 = arith.addf %228, %233 : vector<16x16xf32>
    %c35 = arith.constant 35 : index
    %235 = memref.load %arg2[%c35] : memref<98xf32, #tpu.memory_space<smem>>
    %c0_132 = arith.constant 0 : index
    %c5_133 = arith.constant 5 : index
    %c0_134 = arith.constant 0 : index
    %236 = vector.load %arg5[%c0_132, %c5_133, %c0_134] : memref<2x22x22xf32, #tpu.memory_space<vmem>>, vector<1x16x16xf32>
    %237 = vector.shape_cast %236 : vector<1x16x16xf32> to vector<16x16xf32>
    %238 = vector.broadcast %235 : f32 to vector<16x16xf32>
    %239 = arith.mulf %238, %237 : vector<16x16xf32>
    %240 = arith.addf %234, %239 : vector<16x16xf32>
    %c36 = arith.constant 36 : index
    %241 = memref.load %arg2[%c36] : memref<98xf32, #tpu.memory_space<smem>>
    %c0_135 = arith.constant 0 : index
    %c5_136 = arith.constant 5 : index
    %c1_137 = arith.constant 1 : index
    %242 = vector.load %arg5[%c0_135, %c5_136, %c1_137] : memref<2x22x22xf32, #tpu.memory_space<vmem>>, vector<1x16x16xf32>
    %243 = vector.shape_cast %242 : vector<1x16x16xf32> to vector<16x16xf32>
    %244 = vector.broadcast %241 : f32 to vector<16x16xf32>
    %245 = arith.mulf %244, %243 : vector<16x16xf32>
    %246 = arith.addf %240, %245 : vector<16x16xf32>
    %c37 = arith.constant 37 : index
    %247 = memref.load %arg2[%c37] : memref<98xf32, #tpu.memory_space<smem>>
    %c0_138 = arith.constant 0 : index
    %c5_139 = arith.constant 5 : index
    %c2_140 = arith.constant 2 : index
    %248 = vector.load %arg5[%c0_138, %c5_139, %c2_140] : memref<2x22x22xf32, #tpu.memory_space<vmem>>, vector<1x16x16xf32>
    %249 = vector.shape_cast %248 : vector<1x16x16xf32> to vector<16x16xf32>
    %250 = vector.broadcast %247 : f32 to vector<16x16xf32>
    %251 = arith.mulf %250, %249 : vector<16x16xf32>
    %252 = arith.addf %246, %251 : vector<16x16xf32>
    %c38 = arith.constant 38 : index
    %253 = memref.load %arg2[%c38] : memref<98xf32, #tpu.memory_space<smem>>
    %c0_141 = arith.constant 0 : index
    %c5_142 = arith.constant 5 : index
    %c3_143 = arith.constant 3 : index
    %254 = vector.load %arg5[%c0_141, %c5_142, %c3_143] : memref<2x22x22xf32, #tpu.memory_space<vmem>>, vector<1x16x16xf32>
    %255 = vector.shape_cast %254 : vector<1x16x16xf32> to vector<16x16xf32>
    %256 = vector.broadcast %253 : f32 to vector<16x16xf32>
    %257 = arith.mulf %256, %255 : vector<16x16xf32>
    %258 = arith.addf %252, %257 : vector<16x16xf32>
    %c39 = arith.constant 39 : index
    %259 = memref.load %arg2[%c39] : memref<98xf32, #tpu.memory_space<smem>>
    %c0_144 = arith.constant 0 : index
    %c5_145 = arith.constant 5 : index
    %c4_146 = arith.constant 4 : index
    %260 = vector.load %arg5[%c0_144, %c5_145, %c4_146] : memref<2x22x22xf32, #tpu.memory_space<vmem>>, vector<1x16x16xf32>
    %261 = vector.shape_cast %260 : vector<1x16x16xf32> to vector<16x16xf32>
    %262 = vector.broadcast %259 : f32 to vector<16x16xf32>
    %263 = arith.mulf %262, %261 : vector<16x16xf32>
    %264 = arith.addf %258, %263 : vector<16x16xf32>
    %c40 = arith.constant 40 : index
    %265 = memref.load %arg2[%c40] : memref<98xf32, #tpu.memory_space<smem>>
    %c0_147 = arith.constant 0 : index
    %c5_148 = arith.constant 5 : index
    %c5_149 = arith.constant 5 : index
    %266 = vector.load %arg5[%c0_147, %c5_148, %c5_149] : memref<2x22x22xf32, #tpu.memory_space<vmem>>, vector<1x16x16xf32>
    %267 = vector.shape_cast %266 : vector<1x16x16xf32> to vector<16x16xf32>
    %268 = vector.broadcast %265 : f32 to vector<16x16xf32>
    %269 = arith.mulf %268, %267 : vector<16x16xf32>
    %270 = arith.addf %264, %269 : vector<16x16xf32>
    %c41 = arith.constant 41 : index
    %271 = memref.load %arg2[%c41] : memref<98xf32, #tpu.memory_space<smem>>
    %c0_150 = arith.constant 0 : index
    %c5_151 = arith.constant 5 : index
    %c6_152 = arith.constant 6 : index
    %272 = vector.load %arg5[%c0_150, %c5_151, %c6_152] : memref<2x22x22xf32, #tpu.memory_space<vmem>>, vector<1x16x16xf32>
    %273 = vector.shape_cast %272 : vector<1x16x16xf32> to vector<16x16xf32>
    %274 = vector.broadcast %271 : f32 to vector<16x16xf32>
    %275 = arith.mulf %274, %273 : vector<16x16xf32>
    %276 = arith.addf %270, %275 : vector<16x16xf32>
    %c42 = arith.constant 42 : index
    %277 = memref.load %arg2[%c42] : memref<98xf32, #tpu.memory_space<smem>>
    %c0_153 = arith.constant 0 : index
    %c6_154 = arith.constant 6 : index
    %c0_155 = arith.constant 0 : index
    %278 = vector.load %arg5[%c0_153, %c6_154, %c0_155] : memref<2x22x22xf32, #tpu.memory_space<vmem>>, vector<1x16x16xf32>
    %279 = vector.shape_cast %278 : vector<1x16x16xf32> to vector<16x16xf32>
    %280 = vector.broadcast %277 : f32 to vector<16x16xf32>
    %281 = arith.mulf %280, %279 : vector<16x16xf32>
    %282 = arith.addf %276, %281 : vector<16x16xf32>
    %c43 = arith.constant 43 : index
    %283 = memref.load %arg2[%c43] : memref<98xf32, #tpu.memory_space<smem>>
    %c0_156 = arith.constant 0 : index
    %c6_157 = arith.constant 6 : index
    %c1_158 = arith.constant 1 : index
    %284 = vector.load %arg5[%c0_156, %c6_157, %c1_158] : memref<2x22x22xf32, #tpu.memory_space<vmem>>, vector<1x16x16xf32>
    %285 = vector.shape_cast %284 : vector<1x16x16xf32> to vector<16x16xf32>
    %286 = vector.broadcast %283 : f32 to vector<16x16xf32>
    %287 = arith.mulf %286, %285 : vector<16x16xf32>
    %288 = arith.addf %282, %287 : vector<16x16xf32>
    %c44 = arith.constant 44 : index
    %289 = memref.load %arg2[%c44] : memref<98xf32, #tpu.memory_space<smem>>
    %c0_159 = arith.constant 0 : index
    %c6_160 = arith.constant 6 : index
    %c2_161 = arith.constant 2 : index
    %290 = vector.load %arg5[%c0_159, %c6_160, %c2_161] : memref<2x22x22xf32, #tpu.memory_space<vmem>>, vector<1x16x16xf32>
    %291 = vector.shape_cast %290 : vector<1x16x16xf32> to vector<16x16xf32>
    %292 = vector.broadcast %289 : f32 to vector<16x16xf32>
    %293 = arith.mulf %292, %291 : vector<16x16xf32>
    %294 = arith.addf %288, %293 : vector<16x16xf32>
    %c45 = arith.constant 45 : index
    %295 = memref.load %arg2[%c45] : memref<98xf32, #tpu.memory_space<smem>>
    %c0_162 = arith.constant 0 : index
    %c6_163 = arith.constant 6 : index
    %c3_164 = arith.constant 3 : index
    %296 = vector.load %arg5[%c0_162, %c6_163, %c3_164] : memref<2x22x22xf32, #tpu.memory_space<vmem>>, vector<1x16x16xf32>
    %297 = vector.shape_cast %296 : vector<1x16x16xf32> to vector<16x16xf32>
    %298 = vector.broadcast %295 : f32 to vector<16x16xf32>
    %299 = arith.mulf %298, %297 : vector<16x16xf32>
    %300 = arith.addf %294, %299 : vector<16x16xf32>
    %c46 = arith.constant 46 : index
    %301 = memref.load %arg2[%c46] : memref<98xf32, #tpu.memory_space<smem>>
    %c0_165 = arith.constant 0 : index
    %c6_166 = arith.constant 6 : index
    %c4_167 = arith.constant 4 : index
    %302 = vector.load %arg5[%c0_165, %c6_166, %c4_167] : memref<2x22x22xf32, #tpu.memory_space<vmem>>, vector<1x16x16xf32>
    %303 = vector.shape_cast %302 : vector<1x16x16xf32> to vector<16x16xf32>
    %304 = vector.broadcast %301 : f32 to vector<16x16xf32>
    %305 = arith.mulf %304, %303 : vector<16x16xf32>
    %306 = arith.addf %300, %305 : vector<16x16xf32>
    %c47 = arith.constant 47 : index
    %307 = memref.load %arg2[%c47] : memref<98xf32, #tpu.memory_space<smem>>
    %c0_168 = arith.constant 0 : index
    %c6_169 = arith.constant 6 : index
    %c5_170 = arith.constant 5 : index
    %308 = vector.load %arg5[%c0_168, %c6_169, %c5_170] : memref<2x22x22xf32, #tpu.memory_space<vmem>>, vector<1x16x16xf32>
    %309 = vector.shape_cast %308 : vector<1x16x16xf32> to vector<16x16xf32>
    %310 = vector.broadcast %307 : f32 to vector<16x16xf32>
    %311 = arith.mulf %310, %309 : vector<16x16xf32>
    %312 = arith.addf %306, %311 : vector<16x16xf32>
    %c48 = arith.constant 48 : index
    %313 = memref.load %arg2[%c48] : memref<98xf32, #tpu.memory_space<smem>>
    %c0_171 = arith.constant 0 : index
    %c6_172 = arith.constant 6 : index
    %c6_173 = arith.constant 6 : index
    %314 = vector.load %arg5[%c0_171, %c6_172, %c6_173] : memref<2x22x22xf32, #tpu.memory_space<vmem>>, vector<1x16x16xf32>
    %315 = vector.shape_cast %314 : vector<1x16x16xf32> to vector<16x16xf32>
    %316 = vector.broadcast %313 : f32 to vector<16x16xf32>
    %317 = arith.mulf %316, %315 : vector<16x16xf32>
    %318 = arith.addf %312, %317 : vector<16x16xf32>
    %c49 = arith.constant 49 : index
    %319 = memref.load %arg2[%c49] : memref<98xf32, #tpu.memory_space<smem>>
    %c1_174 = arith.constant 1 : index
    %c0_175 = arith.constant 0 : index
    %c0_176 = arith.constant 0 : index
    %320 = vector.load %arg5[%c1_174, %c0_175, %c0_176] : memref<2x22x22xf32, #tpu.memory_space<vmem>>, vector<1x16x16xf32>
    %321 = vector.shape_cast %320 : vector<1x16x16xf32> to vector<16x16xf32>
    %322 = vector.broadcast %319 : f32 to vector<16x16xf32>
    %323 = arith.mulf %322, %321 : vector<16x16xf32>
    %324 = arith.addf %318, %323 : vector<16x16xf32>
    %c50 = arith.constant 50 : index
    %325 = memref.load %arg2[%c50] : memref<98xf32, #tpu.memory_space<smem>>
    %c1_177 = arith.constant 1 : index
    %c0_178 = arith.constant 0 : index
    %c1_179 = arith.constant 1 : index
    %326 = vector.load %arg5[%c1_177, %c0_178, %c1_179] : memref<2x22x22xf32, #tpu.memory_space<vmem>>, vector<1x16x16xf32>
    %327 = vector.shape_cast %326 : vector<1x16x16xf32> to vector<16x16xf32>
    %328 = vector.broadcast %325 : f32 to vector<16x16xf32>
    %329 = arith.mulf %328, %327 : vector<16x16xf32>
    %330 = arith.addf %324, %329 : vector<16x16xf32>
    %c51 = arith.constant 51 : index
    %331 = memref.load %arg2[%c51] : memref<98xf32, #tpu.memory_space<smem>>
    %c1_180 = arith.constant 1 : index
    %c0_181 = arith.constant 0 : index
    %c2_182 = arith.constant 2 : index
    %332 = vector.load %arg5[%c1_180, %c0_181, %c2_182] : memref<2x22x22xf32, #tpu.memory_space<vmem>>, vector<1x16x16xf32>
    %333 = vector.shape_cast %332 : vector<1x16x16xf32> to vector<16x16xf32>
    %334 = vector.broadcast %331 : f32 to vector<16x16xf32>
    %335 = arith.mulf %334, %333 : vector<16x16xf32>
    %336 = arith.addf %330, %335 : vector<16x16xf32>
    %c52 = arith.constant 52 : index
    %337 = memref.load %arg2[%c52] : memref<98xf32, #tpu.memory_space<smem>>
    %c1_183 = arith.constant 1 : index
    %c0_184 = arith.constant 0 : index
    %c3_185 = arith.constant 3 : index
    %338 = vector.load %arg5[%c1_183, %c0_184, %c3_185] : memref<2x22x22xf32, #tpu.memory_space<vmem>>, vector<1x16x16xf32>
    %339 = vector.shape_cast %338 : vector<1x16x16xf32> to vector<16x16xf32>
    %340 = vector.broadcast %337 : f32 to vector<16x16xf32>
    %341 = arith.mulf %340, %339 : vector<16x16xf32>
    %342 = arith.addf %336, %341 : vector<16x16xf32>
    %c53 = arith.constant 53 : index
    %343 = memref.load %arg2[%c53] : memref<98xf32, #tpu.memory_space<smem>>
    %c1_186 = arith.constant 1 : index
    %c0_187 = arith.constant 0 : index
    %c4_188 = arith.constant 4 : index
    %344 = vector.load %arg5[%c1_186, %c0_187, %c4_188] : memref<2x22x22xf32, #tpu.memory_space<vmem>>, vector<1x16x16xf32>
    %345 = vector.shape_cast %344 : vector<1x16x16xf32> to vector<16x16xf32>
    %346 = vector.broadcast %343 : f32 to vector<16x16xf32>
    %347 = arith.mulf %346, %345 : vector<16x16xf32>
    %348 = arith.addf %342, %347 : vector<16x16xf32>
    %c54 = arith.constant 54 : index
    %349 = memref.load %arg2[%c54] : memref<98xf32, #tpu.memory_space<smem>>
    %c1_189 = arith.constant 1 : index
    %c0_190 = arith.constant 0 : index
    %c5_191 = arith.constant 5 : index
    %350 = vector.load %arg5[%c1_189, %c0_190, %c5_191] : memref<2x22x22xf32, #tpu.memory_space<vmem>>, vector<1x16x16xf32>
    %351 = vector.shape_cast %350 : vector<1x16x16xf32> to vector<16x16xf32>
    %352 = vector.broadcast %349 : f32 to vector<16x16xf32>
    %353 = arith.mulf %352, %351 : vector<16x16xf32>
    %354 = arith.addf %348, %353 : vector<16x16xf32>
    %c55 = arith.constant 55 : index
    %355 = memref.load %arg2[%c55] : memref<98xf32, #tpu.memory_space<smem>>
    %c1_192 = arith.constant 1 : index
    %c0_193 = arith.constant 0 : index
    %c6_194 = arith.constant 6 : index
    %356 = vector.load %arg5[%c1_192, %c0_193, %c6_194] : memref<2x22x22xf32, #tpu.memory_space<vmem>>, vector<1x16x16xf32>
    %357 = vector.shape_cast %356 : vector<1x16x16xf32> to vector<16x16xf32>
    %358 = vector.broadcast %355 : f32 to vector<16x16xf32>
    %359 = arith.mulf %358, %357 : vector<16x16xf32>
    %360 = arith.addf %354, %359 : vector<16x16xf32>
    %c56 = arith.constant 56 : index
    %361 = memref.load %arg2[%c56] : memref<98xf32, #tpu.memory_space<smem>>
    %c1_195 = arith.constant 1 : index
    %c1_196 = arith.constant 1 : index
    %c0_197 = arith.constant 0 : index
    %362 = vector.load %arg5[%c1_195, %c1_196, %c0_197] : memref<2x22x22xf32, #tpu.memory_space<vmem>>, vector<1x16x16xf32>
    %363 = vector.shape_cast %362 : vector<1x16x16xf32> to vector<16x16xf32>
    %364 = vector.broadcast %361 : f32 to vector<16x16xf32>
    %365 = arith.mulf %364, %363 : vector<16x16xf32>
    %366 = arith.addf %360, %365 : vector<16x16xf32>
    %c57 = arith.constant 57 : index
    %367 = memref.load %arg2[%c57] : memref<98xf32, #tpu.memory_space<smem>>
    %c1_198 = arith.constant 1 : index
    %c1_199 = arith.constant 1 : index
    %c1_200 = arith.constant 1 : index
    %368 = vector.load %arg5[%c1_198, %c1_199, %c1_200] : memref<2x22x22xf32, #tpu.memory_space<vmem>>, vector<1x16x16xf32>
    %369 = vector.shape_cast %368 : vector<1x16x16xf32> to vector<16x16xf32>
    %370 = vector.broadcast %367 : f32 to vector<16x16xf32>
    %371 = arith.mulf %370, %369 : vector<16x16xf32>
    %372 = arith.addf %366, %371 : vector<16x16xf32>
    %c58 = arith.constant 58 : index
    %373 = memref.load %arg2[%c58] : memref<98xf32, #tpu.memory_space<smem>>
    %c1_201 = arith.constant 1 : index
    %c1_202 = arith.constant 1 : index
    %c2_203 = arith.constant 2 : index
    %374 = vector.load %arg5[%c1_201, %c1_202, %c2_203] : memref<2x22x22xf32, #tpu.memory_space<vmem>>, vector<1x16x16xf32>
    %375 = vector.shape_cast %374 : vector<1x16x16xf32> to vector<16x16xf32>
    %376 = vector.broadcast %373 : f32 to vector<16x16xf32>
    %377 = arith.mulf %376, %375 : vector<16x16xf32>
    %378 = arith.addf %372, %377 : vector<16x16xf32>
    %c59 = arith.constant 59 : index
    %379 = memref.load %arg2[%c59] : memref<98xf32, #tpu.memory_space<smem>>
    %c1_204 = arith.constant 1 : index
    %c1_205 = arith.constant 1 : index
    %c3_206 = arith.constant 3 : index
    %380 = vector.load %arg5[%c1_204, %c1_205, %c3_206] : memref<2x22x22xf32, #tpu.memory_space<vmem>>, vector<1x16x16xf32>
    %381 = vector.shape_cast %380 : vector<1x16x16xf32> to vector<16x16xf32>
    %382 = vector.broadcast %379 : f32 to vector<16x16xf32>
    %383 = arith.mulf %382, %381 : vector<16x16xf32>
    %384 = arith.addf %378, %383 : vector<16x16xf32>
    %c60 = arith.constant 60 : index
    %385 = memref.load %arg2[%c60] : memref<98xf32, #tpu.memory_space<smem>>
    %c1_207 = arith.constant 1 : index
    %c1_208 = arith.constant 1 : index
    %c4_209 = arith.constant 4 : index
    %386 = vector.load %arg5[%c1_207, %c1_208, %c4_209] : memref<2x22x22xf32, #tpu.memory_space<vmem>>, vector<1x16x16xf32>
    %387 = vector.shape_cast %386 : vector<1x16x16xf32> to vector<16x16xf32>
    %388 = vector.broadcast %385 : f32 to vector<16x16xf32>
    %389 = arith.mulf %388, %387 : vector<16x16xf32>
    %390 = arith.addf %384, %389 : vector<16x16xf32>
    %c61 = arith.constant 61 : index
    %391 = memref.load %arg2[%c61] : memref<98xf32, #tpu.memory_space<smem>>
    %c1_210 = arith.constant 1 : index
    %c1_211 = arith.constant 1 : index
    %c5_212 = arith.constant 5 : index
    %392 = vector.load %arg5[%c1_210, %c1_211, %c5_212] : memref<2x22x22xf32, #tpu.memory_space<vmem>>, vector<1x16x16xf32>
    %393 = vector.shape_cast %392 : vector<1x16x16xf32> to vector<16x16xf32>
    %394 = vector.broadcast %391 : f32 to vector<16x16xf32>
    %395 = arith.mulf %394, %393 : vector<16x16xf32>
    %396 = arith.addf %390, %395 : vector<16x16xf32>
    %c62 = arith.constant 62 : index
    %397 = memref.load %arg2[%c62] : memref<98xf32, #tpu.memory_space<smem>>
    %c1_213 = arith.constant 1 : index
    %c1_214 = arith.constant 1 : index
    %c6_215 = arith.constant 6 : index
    %398 = vector.load %arg5[%c1_213, %c1_214, %c6_215] : memref<2x22x22xf32, #tpu.memory_space<vmem>>, vector<1x16x16xf32>
    %399 = vector.shape_cast %398 : vector<1x16x16xf32> to vector<16x16xf32>
    %400 = vector.broadcast %397 : f32 to vector<16x16xf32>
    %401 = arith.mulf %400, %399 : vector<16x16xf32>
    %402 = arith.addf %396, %401 : vector<16x16xf32>
    %c63 = arith.constant 63 : index
    %403 = memref.load %arg2[%c63] : memref<98xf32, #tpu.memory_space<smem>>
    %c1_216 = arith.constant 1 : index
    %c2_217 = arith.constant 2 : index
    %c0_218 = arith.constant 0 : index
    %404 = vector.load %arg5[%c1_216, %c2_217, %c0_218] : memref<2x22x22xf32, #tpu.memory_space<vmem>>, vector<1x16x16xf32>
    %405 = vector.shape_cast %404 : vector<1x16x16xf32> to vector<16x16xf32>
    %406 = vector.broadcast %403 : f32 to vector<16x16xf32>
    %407 = arith.mulf %406, %405 : vector<16x16xf32>
    %408 = arith.addf %402, %407 : vector<16x16xf32>
    %c64 = arith.constant 64 : index
    %409 = memref.load %arg2[%c64] : memref<98xf32, #tpu.memory_space<smem>>
    %c1_219 = arith.constant 1 : index
    %c2_220 = arith.constant 2 : index
    %c1_221 = arith.constant 1 : index
    %410 = vector.load %arg5[%c1_219, %c2_220, %c1_221] : memref<2x22x22xf32, #tpu.memory_space<vmem>>, vector<1x16x16xf32>
    %411 = vector.shape_cast %410 : vector<1x16x16xf32> to vector<16x16xf32>
    %412 = vector.broadcast %409 : f32 to vector<16x16xf32>
    %413 = arith.mulf %412, %411 : vector<16x16xf32>
    %414 = arith.addf %408, %413 : vector<16x16xf32>
    %c65 = arith.constant 65 : index
    %415 = memref.load %arg2[%c65] : memref<98xf32, #tpu.memory_space<smem>>
    %c1_222 = arith.constant 1 : index
    %c2_223 = arith.constant 2 : index
    %c2_224 = arith.constant 2 : index
    %416 = vector.load %arg5[%c1_222, %c2_223, %c2_224] : memref<2x22x22xf32, #tpu.memory_space<vmem>>, vector<1x16x16xf32>
    %417 = vector.shape_cast %416 : vector<1x16x16xf32> to vector<16x16xf32>
    %418 = vector.broadcast %415 : f32 to vector<16x16xf32>
    %419 = arith.mulf %418, %417 : vector<16x16xf32>
    %420 = arith.addf %414, %419 : vector<16x16xf32>
    %c66 = arith.constant 66 : index
    %421 = memref.load %arg2[%c66] : memref<98xf32, #tpu.memory_space<smem>>
    %c1_225 = arith.constant 1 : index
    %c2_226 = arith.constant 2 : index
    %c3_227 = arith.constant 3 : index
    %422 = vector.load %arg5[%c1_225, %c2_226, %c3_227] : memref<2x22x22xf32, #tpu.memory_space<vmem>>, vector<1x16x16xf32>
    %423 = vector.shape_cast %422 : vector<1x16x16xf32> to vector<16x16xf32>
    %424 = vector.broadcast %421 : f32 to vector<16x16xf32>
    %425 = arith.mulf %424, %423 : vector<16x16xf32>
    %426 = arith.addf %420, %425 : vector<16x16xf32>
    %c67 = arith.constant 67 : index
    %427 = memref.load %arg2[%c67] : memref<98xf32, #tpu.memory_space<smem>>
    %c1_228 = arith.constant 1 : index
    %c2_229 = arith.constant 2 : index
    %c4_230 = arith.constant 4 : index
    %428 = vector.load %arg5[%c1_228, %c2_229, %c4_230] : memref<2x22x22xf32, #tpu.memory_space<vmem>>, vector<1x16x16xf32>
    %429 = vector.shape_cast %428 : vector<1x16x16xf32> to vector<16x16xf32>
    %430 = vector.broadcast %427 : f32 to vector<16x16xf32>
    %431 = arith.mulf %430, %429 : vector<16x16xf32>
    %432 = arith.addf %426, %431 : vector<16x16xf32>
    %c68 = arith.constant 68 : index
    %433 = memref.load %arg2[%c68] : memref<98xf32, #tpu.memory_space<smem>>
    %c1_231 = arith.constant 1 : index
    %c2_232 = arith.constant 2 : index
    %c5_233 = arith.constant 5 : index
    %434 = vector.load %arg5[%c1_231, %c2_232, %c5_233] : memref<2x22x22xf32, #tpu.memory_space<vmem>>, vector<1x16x16xf32>
    %435 = vector.shape_cast %434 : vector<1x16x16xf32> to vector<16x16xf32>
    %436 = vector.broadcast %433 : f32 to vector<16x16xf32>
    %437 = arith.mulf %436, %435 : vector<16x16xf32>
    %438 = arith.addf %432, %437 : vector<16x16xf32>
    %c69 = arith.constant 69 : index
    %439 = memref.load %arg2[%c69] : memref<98xf32, #tpu.memory_space<smem>>
    %c1_234 = arith.constant 1 : index
    %c2_235 = arith.constant 2 : index
    %c6_236 = arith.constant 6 : index
    %440 = vector.load %arg5[%c1_234, %c2_235, %c6_236] : memref<2x22x22xf32, #tpu.memory_space<vmem>>, vector<1x16x16xf32>
    %441 = vector.shape_cast %440 : vector<1x16x16xf32> to vector<16x16xf32>
    %442 = vector.broadcast %439 : f32 to vector<16x16xf32>
    %443 = arith.mulf %442, %441 : vector<16x16xf32>
    %444 = arith.addf %438, %443 : vector<16x16xf32>
    %c70 = arith.constant 70 : index
    %445 = memref.load %arg2[%c70] : memref<98xf32, #tpu.memory_space<smem>>
    %c1_237 = arith.constant 1 : index
    %c3_238 = arith.constant 3 : index
    %c0_239 = arith.constant 0 : index
    %446 = vector.load %arg5[%c1_237, %c3_238, %c0_239] : memref<2x22x22xf32, #tpu.memory_space<vmem>>, vector<1x16x16xf32>
    %447 = vector.shape_cast %446 : vector<1x16x16xf32> to vector<16x16xf32>
    %448 = vector.broadcast %445 : f32 to vector<16x16xf32>
    %449 = arith.mulf %448, %447 : vector<16x16xf32>
    %450 = arith.addf %444, %449 : vector<16x16xf32>
    %c71 = arith.constant 71 : index
    %451 = memref.load %arg2[%c71] : memref<98xf32, #tpu.memory_space<smem>>
    %c1_240 = arith.constant 1 : index
    %c3_241 = arith.constant 3 : index
    %c1_242 = arith.constant 1 : index
    %452 = vector.load %arg5[%c1_240, %c3_241, %c1_242] : memref<2x22x22xf32, #tpu.memory_space<vmem>>, vector<1x16x16xf32>
    %453 = vector.shape_cast %452 : vector<1x16x16xf32> to vector<16x16xf32>
    %454 = vector.broadcast %451 : f32 to vector<16x16xf32>
    %455 = arith.mulf %454, %453 : vector<16x16xf32>
    %456 = arith.addf %450, %455 : vector<16x16xf32>
    %c72 = arith.constant 72 : index
    %457 = memref.load %arg2[%c72] : memref<98xf32, #tpu.memory_space<smem>>
    %c1_243 = arith.constant 1 : index
    %c3_244 = arith.constant 3 : index
    %c2_245 = arith.constant 2 : index
    %458 = vector.load %arg5[%c1_243, %c3_244, %c2_245] : memref<2x22x22xf32, #tpu.memory_space<vmem>>, vector<1x16x16xf32>
    %459 = vector.shape_cast %458 : vector<1x16x16xf32> to vector<16x16xf32>
    %460 = vector.broadcast %457 : f32 to vector<16x16xf32>
    %461 = arith.mulf %460, %459 : vector<16x16xf32>
    %462 = arith.addf %456, %461 : vector<16x16xf32>
    %c73 = arith.constant 73 : index
    %463 = memref.load %arg2[%c73] : memref<98xf32, #tpu.memory_space<smem>>
    %c1_246 = arith.constant 1 : index
    %c3_247 = arith.constant 3 : index
    %c3_248 = arith.constant 3 : index
    %464 = vector.load %arg5[%c1_246, %c3_247, %c3_248] : memref<2x22x22xf32, #tpu.memory_space<vmem>>, vector<1x16x16xf32>
    %465 = vector.shape_cast %464 : vector<1x16x16xf32> to vector<16x16xf32>
    %466 = vector.broadcast %463 : f32 to vector<16x16xf32>
    %467 = arith.mulf %466, %465 : vector<16x16xf32>
    %468 = arith.addf %462, %467 : vector<16x16xf32>
    %c74 = arith.constant 74 : index
    %469 = memref.load %arg2[%c74] : memref<98xf32, #tpu.memory_space<smem>>
    %c1_249 = arith.constant 1 : index
    %c3_250 = arith.constant 3 : index
    %c4_251 = arith.constant 4 : index
    %470 = vector.load %arg5[%c1_249, %c3_250, %c4_251] : memref<2x22x22xf32, #tpu.memory_space<vmem>>, vector<1x16x16xf32>
    %471 = vector.shape_cast %470 : vector<1x16x16xf32> to vector<16x16xf32>
    %472 = vector.broadcast %469 : f32 to vector<16x16xf32>
    %473 = arith.mulf %472, %471 : vector<16x16xf32>
    %474 = arith.addf %468, %473 : vector<16x16xf32>
    %c75 = arith.constant 75 : index
    %475 = memref.load %arg2[%c75] : memref<98xf32, #tpu.memory_space<smem>>
    %c1_252 = arith.constant 1 : index
    %c3_253 = arith.constant 3 : index
    %c5_254 = arith.constant 5 : index
    %476 = vector.load %arg5[%c1_252, %c3_253, %c5_254] : memref<2x22x22xf32, #tpu.memory_space<vmem>>, vector<1x16x16xf32>
    %477 = vector.shape_cast %476 : vector<1x16x16xf32> to vector<16x16xf32>
    %478 = vector.broadcast %475 : f32 to vector<16x16xf32>
    %479 = arith.mulf %478, %477 : vector<16x16xf32>
    %480 = arith.addf %474, %479 : vector<16x16xf32>
    %c76 = arith.constant 76 : index
    %481 = memref.load %arg2[%c76] : memref<98xf32, #tpu.memory_space<smem>>
    %c1_255 = arith.constant 1 : index
    %c3_256 = arith.constant 3 : index
    %c6_257 = arith.constant 6 : index
    %482 = vector.load %arg5[%c1_255, %c3_256, %c6_257] : memref<2x22x22xf32, #tpu.memory_space<vmem>>, vector<1x16x16xf32>
    %483 = vector.shape_cast %482 : vector<1x16x16xf32> to vector<16x16xf32>
    %484 = vector.broadcast %481 : f32 to vector<16x16xf32>
    %485 = arith.mulf %484, %483 : vector<16x16xf32>
    %486 = arith.addf %480, %485 : vector<16x16xf32>
    %c77 = arith.constant 77 : index
    %487 = memref.load %arg2[%c77] : memref<98xf32, #tpu.memory_space<smem>>
    %c1_258 = arith.constant 1 : index
    %c4_259 = arith.constant 4 : index
    %c0_260 = arith.constant 0 : index
    %488 = vector.load %arg5[%c1_258, %c4_259, %c0_260] : memref<2x22x22xf32, #tpu.memory_space<vmem>>, vector<1x16x16xf32>
    %489 = vector.shape_cast %488 : vector<1x16x16xf32> to vector<16x16xf32>
    %490 = vector.broadcast %487 : f32 to vector<16x16xf32>
    %491 = arith.mulf %490, %489 : vector<16x16xf32>
    %492 = arith.addf %486, %491 : vector<16x16xf32>
    %c78 = arith.constant 78 : index
    %493 = memref.load %arg2[%c78] : memref<98xf32, #tpu.memory_space<smem>>
    %c1_261 = arith.constant 1 : index
    %c4_262 = arith.constant 4 : index
    %c1_263 = arith.constant 1 : index
    %494 = vector.load %arg5[%c1_261, %c4_262, %c1_263] : memref<2x22x22xf32, #tpu.memory_space<vmem>>, vector<1x16x16xf32>
    %495 = vector.shape_cast %494 : vector<1x16x16xf32> to vector<16x16xf32>
    %496 = vector.broadcast %493 : f32 to vector<16x16xf32>
    %497 = arith.mulf %496, %495 : vector<16x16xf32>
    %498 = arith.addf %492, %497 : vector<16x16xf32>
    %c79 = arith.constant 79 : index
    %499 = memref.load %arg2[%c79] : memref<98xf32, #tpu.memory_space<smem>>
    %c1_264 = arith.constant 1 : index
    %c4_265 = arith.constant 4 : index
    %c2_266 = arith.constant 2 : index
    %500 = vector.load %arg5[%c1_264, %c4_265, %c2_266] : memref<2x22x22xf32, #tpu.memory_space<vmem>>, vector<1x16x16xf32>
    %501 = vector.shape_cast %500 : vector<1x16x16xf32> to vector<16x16xf32>
    %502 = vector.broadcast %499 : f32 to vector<16x16xf32>
    %503 = arith.mulf %502, %501 : vector<16x16xf32>
    %504 = arith.addf %498, %503 : vector<16x16xf32>
    %c80 = arith.constant 80 : index
    %505 = memref.load %arg2[%c80] : memref<98xf32, #tpu.memory_space<smem>>
    %c1_267 = arith.constant 1 : index
    %c4_268 = arith.constant 4 : index
    %c3_269 = arith.constant 3 : index
    %506 = vector.load %arg5[%c1_267, %c4_268, %c3_269] : memref<2x22x22xf32, #tpu.memory_space<vmem>>, vector<1x16x16xf32>
    %507 = vector.shape_cast %506 : vector<1x16x16xf32> to vector<16x16xf32>
    %508 = vector.broadcast %505 : f32 to vector<16x16xf32>
    %509 = arith.mulf %508, %507 : vector<16x16xf32>
    %510 = arith.addf %504, %509 : vector<16x16xf32>
    %c81 = arith.constant 81 : index
    %511 = memref.load %arg2[%c81] : memref<98xf32, #tpu.memory_space<smem>>
    %c1_270 = arith.constant 1 : index
    %c4_271 = arith.constant 4 : index
    %c4_272 = arith.constant 4 : index
    %512 = vector.load %arg5[%c1_270, %c4_271, %c4_272] : memref<2x22x22xf32, #tpu.memory_space<vmem>>, vector<1x16x16xf32>
    %513 = vector.shape_cast %512 : vector<1x16x16xf32> to vector<16x16xf32>
    %514 = vector.broadcast %511 : f32 to vector<16x16xf32>
    %515 = arith.mulf %514, %513 : vector<16x16xf32>
    %516 = arith.addf %510, %515 : vector<16x16xf32>
    %c82 = arith.constant 82 : index
    %517 = memref.load %arg2[%c82] : memref<98xf32, #tpu.memory_space<smem>>
    %c1_273 = arith.constant 1 : index
    %c4_274 = arith.constant 4 : index
    %c5_275 = arith.constant 5 : index
    %518 = vector.load %arg5[%c1_273, %c4_274, %c5_275] : memref<2x22x22xf32, #tpu.memory_space<vmem>>, vector<1x16x16xf32>
    %519 = vector.shape_cast %518 : vector<1x16x16xf32> to vector<16x16xf32>
    %520 = vector.broadcast %517 : f32 to vector<16x16xf32>
    %521 = arith.mulf %520, %519 : vector<16x16xf32>
    %522 = arith.addf %516, %521 : vector<16x16xf32>
    %c83 = arith.constant 83 : index
    %523 = memref.load %arg2[%c83] : memref<98xf32, #tpu.memory_space<smem>>
    %c1_276 = arith.constant 1 : index
    %c4_277 = arith.constant 4 : index
    %c6_278 = arith.constant 6 : index
    %524 = vector.load %arg5[%c1_276, %c4_277, %c6_278] : memref<2x22x22xf32, #tpu.memory_space<vmem>>, vector<1x16x16xf32>
    %525 = vector.shape_cast %524 : vector<1x16x16xf32> to vector<16x16xf32>
    %526 = vector.broadcast %523 : f32 to vector<16x16xf32>
    %527 = arith.mulf %526, %525 : vector<16x16xf32>
    %528 = arith.addf %522, %527 : vector<16x16xf32>
    %c84 = arith.constant 84 : index
    %529 = memref.load %arg2[%c84] : memref<98xf32, #tpu.memory_space<smem>>
    %c1_279 = arith.constant 1 : index
    %c5_280 = arith.constant 5 : index
    %c0_281 = arith.constant 0 : index
    %530 = vector.load %arg5[%c1_279, %c5_280, %c0_281] : memref<2x22x22xf32, #tpu.memory_space<vmem>>, vector<1x16x16xf32>
    %531 = vector.shape_cast %530 : vector<1x16x16xf32> to vector<16x16xf32>
    %532 = vector.broadcast %529 : f32 to vector<16x16xf32>
    %533 = arith.mulf %532, %531 : vector<16x16xf32>
    %534 = arith.addf %528, %533 : vector<16x16xf32>
    %c85 = arith.constant 85 : index
    %535 = memref.load %arg2[%c85] : memref<98xf32, #tpu.memory_space<smem>>
    %c1_282 = arith.constant 1 : index
    %c5_283 = arith.constant 5 : index
    %c1_284 = arith.constant 1 : index
    %536 = vector.load %arg5[%c1_282, %c5_283, %c1_284] : memref<2x22x22xf32, #tpu.memory_space<vmem>>, vector<1x16x16xf32>
    %537 = vector.shape_cast %536 : vector<1x16x16xf32> to vector<16x16xf32>
    %538 = vector.broadcast %535 : f32 to vector<16x16xf32>
    %539 = arith.mulf %538, %537 : vector<16x16xf32>
    %540 = arith.addf %534, %539 : vector<16x16xf32>
    %c86 = arith.constant 86 : index
    %541 = memref.load %arg2[%c86] : memref<98xf32, #tpu.memory_space<smem>>
    %c1_285 = arith.constant 1 : index
    %c5_286 = arith.constant 5 : index
    %c2_287 = arith.constant 2 : index
    %542 = vector.load %arg5[%c1_285, %c5_286, %c2_287] : memref<2x22x22xf32, #tpu.memory_space<vmem>>, vector<1x16x16xf32>
    %543 = vector.shape_cast %542 : vector<1x16x16xf32> to vector<16x16xf32>
    %544 = vector.broadcast %541 : f32 to vector<16x16xf32>
    %545 = arith.mulf %544, %543 : vector<16x16xf32>
    %546 = arith.addf %540, %545 : vector<16x16xf32>
    %c87 = arith.constant 87 : index
    %547 = memref.load %arg2[%c87] : memref<98xf32, #tpu.memory_space<smem>>
    %c1_288 = arith.constant 1 : index
    %c5_289 = arith.constant 5 : index
    %c3_290 = arith.constant 3 : index
    %548 = vector.load %arg5[%c1_288, %c5_289, %c3_290] : memref<2x22x22xf32, #tpu.memory_space<vmem>>, vector<1x16x16xf32>
    %549 = vector.shape_cast %548 : vector<1x16x16xf32> to vector<16x16xf32>
    %550 = vector.broadcast %547 : f32 to vector<16x16xf32>
    %551 = arith.mulf %550, %549 : vector<16x16xf32>
    %552 = arith.addf %546, %551 : vector<16x16xf32>
    %c88 = arith.constant 88 : index
    %553 = memref.load %arg2[%c88] : memref<98xf32, #tpu.memory_space<smem>>
    %c1_291 = arith.constant 1 : index
    %c5_292 = arith.constant 5 : index
    %c4_293 = arith.constant 4 : index
    %554 = vector.load %arg5[%c1_291, %c5_292, %c4_293] : memref<2x22x22xf32, #tpu.memory_space<vmem>>, vector<1x16x16xf32>
    %555 = vector.shape_cast %554 : vector<1x16x16xf32> to vector<16x16xf32>
    %556 = vector.broadcast %553 : f32 to vector<16x16xf32>
    %557 = arith.mulf %556, %555 : vector<16x16xf32>
    %558 = arith.addf %552, %557 : vector<16x16xf32>
    %c89 = arith.constant 89 : index
    %559 = memref.load %arg2[%c89] : memref<98xf32, #tpu.memory_space<smem>>
    %c1_294 = arith.constant 1 : index
    %c5_295 = arith.constant 5 : index
    %c5_296 = arith.constant 5 : index
    %560 = vector.load %arg5[%c1_294, %c5_295, %c5_296] : memref<2x22x22xf32, #tpu.memory_space<vmem>>, vector<1x16x16xf32>
    %561 = vector.shape_cast %560 : vector<1x16x16xf32> to vector<16x16xf32>
    %562 = vector.broadcast %559 : f32 to vector<16x16xf32>
    %563 = arith.mulf %562, %561 : vector<16x16xf32>
    %564 = arith.addf %558, %563 : vector<16x16xf32>
    %c90 = arith.constant 90 : index
    %565 = memref.load %arg2[%c90] : memref<98xf32, #tpu.memory_space<smem>>
    %c1_297 = arith.constant 1 : index
    %c5_298 = arith.constant 5 : index
    %c6_299 = arith.constant 6 : index
    %566 = vector.load %arg5[%c1_297, %c5_298, %c6_299] : memref<2x22x22xf32, #tpu.memory_space<vmem>>, vector<1x16x16xf32>
    %567 = vector.shape_cast %566 : vector<1x16x16xf32> to vector<16x16xf32>
    %568 = vector.broadcast %565 : f32 to vector<16x16xf32>
    %569 = arith.mulf %568, %567 : vector<16x16xf32>
    %570 = arith.addf %564, %569 : vector<16x16xf32>
    %c91 = arith.constant 91 : index
    %571 = memref.load %arg2[%c91] : memref<98xf32, #tpu.memory_space<smem>>
    %c1_300 = arith.constant 1 : index
    %c6_301 = arith.constant 6 : index
    %c0_302 = arith.constant 0 : index
    %572 = vector.load %arg5[%c1_300, %c6_301, %c0_302] : memref<2x22x22xf32, #tpu.memory_space<vmem>>, vector<1x16x16xf32>
    %573 = vector.shape_cast %572 : vector<1x16x16xf32> to vector<16x16xf32>
    %574 = vector.broadcast %571 : f32 to vector<16x16xf32>
    %575 = arith.mulf %574, %573 : vector<16x16xf32>
    %576 = arith.addf %570, %575 : vector<16x16xf32>
    %c92 = arith.constant 92 : index
    %577 = memref.load %arg2[%c92] : memref<98xf32, #tpu.memory_space<smem>>
    %c1_303 = arith.constant 1 : index
    %c6_304 = arith.constant 6 : index
    %c1_305 = arith.constant 1 : index
    %578 = vector.load %arg5[%c1_303, %c6_304, %c1_305] : memref<2x22x22xf32, #tpu.memory_space<vmem>>, vector<1x16x16xf32>
    %579 = vector.shape_cast %578 : vector<1x16x16xf32> to vector<16x16xf32>
    %580 = vector.broadcast %577 : f32 to vector<16x16xf32>
    %581 = arith.mulf %580, %579 : vector<16x16xf32>
    %582 = arith.addf %576, %581 : vector<16x16xf32>
    %c93 = arith.constant 93 : index
    %583 = memref.load %arg2[%c93] : memref<98xf32, #tpu.memory_space<smem>>
    %c1_306 = arith.constant 1 : index
    %c6_307 = arith.constant 6 : index
    %c2_308 = arith.constant 2 : index
    %584 = vector.load %arg5[%c1_306, %c6_307, %c2_308] : memref<2x22x22xf32, #tpu.memory_space<vmem>>, vector<1x16x16xf32>
    %585 = vector.shape_cast %584 : vector<1x16x16xf32> to vector<16x16xf32>
    %586 = vector.broadcast %583 : f32 to vector<16x16xf32>
    %587 = arith.mulf %586, %585 : vector<16x16xf32>
    %588 = arith.addf %582, %587 : vector<16x16xf32>
    %c94 = arith.constant 94 : index
    %589 = memref.load %arg2[%c94] : memref<98xf32, #tpu.memory_space<smem>>
    %c1_309 = arith.constant 1 : index
    %c6_310 = arith.constant 6 : index
    %c3_311 = arith.constant 3 : index
    %590 = vector.load %arg5[%c1_309, %c6_310, %c3_311] : memref<2x22x22xf32, #tpu.memory_space<vmem>>, vector<1x16x16xf32>
    %591 = vector.shape_cast %590 : vector<1x16x16xf32> to vector<16x16xf32>
    %592 = vector.broadcast %589 : f32 to vector<16x16xf32>
    %593 = arith.mulf %592, %591 : vector<16x16xf32>
    %594 = arith.addf %588, %593 : vector<16x16xf32>
    %c95 = arith.constant 95 : index
    %595 = memref.load %arg2[%c95] : memref<98xf32, #tpu.memory_space<smem>>
    %c1_312 = arith.constant 1 : index
    %c6_313 = arith.constant 6 : index
    %c4_314 = arith.constant 4 : index
    %596 = vector.load %arg5[%c1_312, %c6_313, %c4_314] : memref<2x22x22xf32, #tpu.memory_space<vmem>>, vector<1x16x16xf32>
    %597 = vector.shape_cast %596 : vector<1x16x16xf32> to vector<16x16xf32>
    %598 = vector.broadcast %595 : f32 to vector<16x16xf32>
    %599 = arith.mulf %598, %597 : vector<16x16xf32>
    %600 = arith.addf %594, %599 : vector<16x16xf32>
    %c96 = arith.constant 96 : index
    %601 = memref.load %arg2[%c96] : memref<98xf32, #tpu.memory_space<smem>>
    %c1_315 = arith.constant 1 : index
    %c6_316 = arith.constant 6 : index
    %c5_317 = arith.constant 5 : index
    %602 = vector.load %arg5[%c1_315, %c6_316, %c5_317] : memref<2x22x22xf32, #tpu.memory_space<vmem>>, vector<1x16x16xf32>
    %603 = vector.shape_cast %602 : vector<1x16x16xf32> to vector<16x16xf32>
    %604 = vector.broadcast %601 : f32 to vector<16x16xf32>
    %605 = arith.mulf %604, %603 : vector<16x16xf32>
    %606 = arith.addf %600, %605 : vector<16x16xf32>
    %c97 = arith.constant 97 : index
    %607 = memref.load %arg2[%c97] : memref<98xf32, #tpu.memory_space<smem>>
    %c1_318 = arith.constant 1 : index
    %c6_319 = arith.constant 6 : index
    %c6_320 = arith.constant 6 : index
    %608 = vector.load %arg5[%c1_318, %c6_319, %c6_320] : memref<2x22x22xf32, #tpu.memory_space<vmem>>, vector<1x16x16xf32>
    %609 = vector.shape_cast %608 : vector<1x16x16xf32> to vector<16x16xf32>
    %610 = vector.broadcast %607 : f32 to vector<16x16xf32>
    %611 = arith.mulf %610, %609 : vector<16x16xf32>
    %612 = arith.addf %606, %611 : vector<16x16xf32>
    %c0_321 = arith.constant 0 : index
    %613 = memref.load %arg3[%c0_321] : memref<1xf32, #tpu.memory_space<smem>>
    %614 = vector.broadcast %613 : f32 to vector<16x16xf32>
    %615 = arith.addf %612, %614 : vector<16x16xf32>
    %cst_322 = arith.constant 0.000000e+00 : f32
    %616 = vector.broadcast %cst_322 : f32 to vector<16x16xf32>
    %617 = arith.subf %616, %615 : vector<16x16xf32>
    %618 = math.exp %617 : vector<16x16xf32>
    %cst_323 = arith.constant 1.000000e+00 : f32
    %619 = vector.broadcast %cst_323 : f32 to vector<16x16xf32>
    %620 = arith.addf %619, %618 : vector<16x16xf32>
    %cst_324 = arith.constant 1.000000e+00 : f32
    %621 = vector.broadcast %cst_324 : f32 to vector<16x16xf32>
    %622 = arith.divf %621, %620 : vector<16x16xf32>
    %c0_325 = arith.constant 0 : index
    %c0_326 = arith.constant 0 : index
    %c0_327 = arith.constant 0 : index
    %623 = vector.load %arg4[%c0_325, %c0_326, %c0_327] : memref<1x16x16xf32, #tpu.memory_space<vmem>>, vector<1x16x16xf32>
    %624 = vector.shape_cast %623 : vector<1x16x16xf32> to vector<16x16xf32>
    %625 = vector.shape_cast %622 : vector<16x16xf32> to vector<1x16x16xf32>
    tpu.vector_store %arg4[%c0_325, %c0_326, %c0_327], %625 {strides = array<i32>} : memref<1x16x16xf32, #tpu.memory_space<vmem>>, vector<1x16x16xf32>,
    return
  }
  func.func @transform_0(%arg0: i32) -> (i32, i32, i32, i32) {
    %c0_i32 = arith.constant 0 : i32
    %c0_i32_0 = arith.constant 0 : i32
    %c0_i32_1 = arith.constant 0 : i32
    %c0_i32_2 = arith.constant 0 : i32
    return %arg0, %c0_i32, %c0_i32_0, %c0_i32_1 : i32, i32, i32, i32
  }
  func.func @transform_1(%arg0: i32) -> i32 {
    %c0_i32 = arith.constant 0 : i32
    %c0_i32_0 = arith.constant 0 : i32
    return %c0_i32 : i32
  }
  func.func @transform_2(%arg0: i32) -> i32 {
    %c0_i32 = arith.constant 0 : i32
    %c0_i32_0 = arith.constant 0 : i32
    return %c0_i32 : i32
  }
  func.func @transform_3(%arg0: i32) -> (i32, i32, i32) {
    %c0_i32 = arith.constant 0 : i32
    %c0_i32_0 = arith.constant 0 : i32
    %c0_i32_1 = arith.constant 0 : i32
    return %arg0, %c0_i32, %c0_i32_0 : i32, i32, i32
  }
}

</mosaic_0001>

<llo_original>
// kernel: tpu_custom_call.1
$region0: #{tpu_custom_call.1}
  #allocation0 [shape = 'u32[]', space=smem, size = 0x4, offset = 0x4, fixed_abs, tag = 'smem constant byte address 0x4 - core index']
  #allocation1 [shape = 'u32[144,128]{1,0:T(1,128)}', space=vmem, size = 0x12000, scoped, tag = 'internal scratch']
  #allocation2 [shape = 'f32[2,22,22]{2,1,0:T(8,128)}', space=vmem, size = 0x6000, scoped, tag = 'scratch operand']
  #allocation3 [shape = 'f32[1]{0:T(128)S(6)}', space=smem, size = 0x200, scoped, tag = 'scoped memory for tpu_custom_call.1']
  %s0 = inlined_call_operand.hbm [shape: f32[2,4,16,16], index: 0, kind: input, shape index: {}]
  %s1 = inlined_call_operand.vmem [shape: f32[98], index: 1, kind: input, shape index: {}]
  %s2 = inlined_call_operand.<no memory space> [shape: f32[1], index: 2, kind: input, shape index: {}]
  %s3 = inlined_call_operand.hbm [shape: f32[2,16,16], index: 3, kind: output, shape index: {}]
  %s4 = sld [smem:[#allocation0]]
  $region53: #{tpu_custom_call.1} parent=0
    _
  %s6 = ssub.s32 1, %s4
  %s7 = scalar_select 0, %s6, %s4
  %8 = sst [smem:[#allocation3]] %s2
  $region1: #{tpu_custom_call.1} parent=0
    #allocation4 [shape = 'u8[65536]{0}', space=vmem, size = 0x10000, scoped, tag = 'input window, operand 0']
    #allocation5 [shape = 's32[2]{0}', space=sflag, size = 0x8, scoped, tag = 'scoped memory for tpu_custom_call.1']
    #allocation6 [shape = 's32[2]{0}', space=sflag, size = 0x8, scoped, tag = 'scoped memory for tpu_custom_call.1']
    #allocation7 [shape = 's32[2]{0}', space=sflag, size = 0x8, scoped, tag = 'scoped memory for tpu_custom_call.1']
    #allocation8 [shape = 'u8[512]{0}', space=smem, size = 0x200, scoped, tag = 'input window, operand 1, single buffered']
    #allocation9 [shape = 'u8[16384]{0}', space=vmem, size = 0x4000, scoped, tag = 'output window, operand 0']
    %9 = vsyncpa [#allocation5], 0
    %s10 = scalar_lea.sflag [#allocation5], 1
    %11 = vsyncpa %s10, 0
    %12 = vsyncpa [#allocation7], 0
    %13 = vsyncpa [#allocation6], 0
    %s14 = scalar_lea.sflag [#allocation6], 1
    %15 = vsyncpa %s14, 0
    loop: start=0, step=1, limit=4
    $region2: #{tpu_custom_call.1} parent=1 // loop_pre_header
      _
    $region3: #{tpu_custom_call.1} parent=1 // loop_header
      %s17 = sphi 0, %s21
      %p18 = scmp.ge.s32.totalorder %s17, 4
      %s27 = sphi 0, %s29
      %s30 = sphi 0, %s27
      %s31 = sphi 0, %s30
      %s47 = sphi 0, %s31
      %s51 = sphi 0, %s51
      %s53 = sphi 0, %s51
      %s54 = sphi 0, %s53
      %s68 = sphi 0, %s54
      %s72 = sphi 0, %s72
      %s74 = sphi 0, %s72
      %s75 = sphi 0, %s74
      %s89 = sphi 0, %s75
      %s95 = sphi 0, %s97
      %s98 = sphi 0, %s95
      %s99 = sphi 0, %s98
      %s115 = sphi 0, %s99
    $region4: #{tpu_custom_call.1} parent=1 // loop_header_branch
      %20 = sbr.rel (%p18) target = $region8
    $region5: #{tpu_custom_call.1} parent=1 // loop_body
      %s22 = ssub.s32 %s17, 1
      %s23 = ssub.s32 %s17, 2
      %s24 = sadd.s32 %s17, 1
      %s25 = ssub.s32 %s17, %s24
      %p26 = scmp.eq.s32.totalorder %s25, 0
      %s28 = sadd.s32 %s27, 1
      %s29 = scalar_select %p26, %s27, %s28
      %p32 = pneg %p26
      %p33 = scmp.eq.s32.totalorder %s17, 1
      %p34 = por %p32, %p33
      %p35 = scmp.ne.s32.totalorder %s27, %s30
      %p36 = scmp.eq.s32.totalorder %s17, 0
      %p37 = por %p35, %p36
      %p38 = scmp.ne.s32.totalorder %s27, %s30
      %p39 = scmp.eq.s32.totalorder %s22, 1
      %p40 = por %p38, %p39
      %p41 = scmp.ne.s32.totalorder %s30, %s31
      %p42 = scmp.eq.s32.totalorder %s22, 0
      %p43 = por %p41, %p42
      %p44 = scmp.ne.s32.totalorder %s30, %s31
      %p45 = scmp.eq.s32.totalorder %s23, 1
      %p46 = por %p44, %p45
      %p48 = scmp.ne.s32.totalorder %s31, %s47
      %p49 = scmp.eq.s32.totalorder %s23, 0
      %p50 = por %p48, %p49
      %s52 = sadd.s32 %s51, 1
      %p55 = scmp.eq.s32.totalorder %s17, 1
      %p56 = scmp.ne.s32.totalorder %s51, %s53
      %p57 = scmp.eq.s32.totalorder %s17, 0
      %p58 = por %p56, %p57
      %p59 = scmp.ne.s32.totalorder %s51, %s53
      %p60 = scmp.eq.s32.totalorder %s22, 1
      %p61 = por %p59, %p60
      %p62 = scmp.ne.s32.totalorder %s53, %s54
      %p63 = scmp.eq.s32.totalorder %s22, 0
      %p64 = por %p62, %p63
      %p65 = scmp.ne.s32.totalorder %s53, %s54
      %p66 = scmp.eq.s32.totalorder %s23, 1
      %p67 = por %p65, %p66
      %p69 = scmp.ne.s32.totalorder %s54, %s68
      %p70 = scmp.eq.s32.totalorder %s23, 0
      %p71 = por %p69, %p70
      %s73 = sadd.s32 %s72, 1
      %p76 = scmp.eq.s32.totalorder %s17, 1
      %p77 = scmp.ne.s32.totalorder %s72, %s74
      %p78 = scmp.eq.s32.totalorder %s17, 0
      %p79 = por %p77, %p78
      %p80 = scmp.ne.s32.totalorder %s72, %s74
      %p81 = scmp.eq.s32.totalorder %s22, 1
      %p82 = por %p80, %p81
      %p83 = scmp.ne.s32.totalorder %s74, %s75
      %p84 = scmp.eq.s32.totalorder %s22, 0
      %p85 = por %p83, %p84
      %p86 = scmp.ne.s32.totalorder %s74, %s75
      %p87 = scmp.eq.s32.totalorder %s23, 1
      %p88 = por %p86, %p87
      %p90 = scmp.ne.s32.totalorder %s75, %s89
      %p91 = scmp.eq.s32.totalorder %s23, 0
      %p92 = por %p90, %p91
      %s93 = ssub.s32 %s17, %s24
      %p94 = scmp.eq.s32.totalorder %s93, 0
      %s96 = sadd.s32 %s95, 1
      %s97 = scalar_select %p94, %s95, %s96
      %p100 = pneg %p94
      %p101 = scmp.eq.s32.totalorder %s17, 1
      %p102 = por %p100, %p101
      %p103 = scmp.ne.s32.totalorder %s95, %s98
      %p104 = scmp.eq.s32.totalorder %s17, 0
      %p105 = por %p103, %p104
      %p106 = scmp.ne.s32.totalorder %s95, %s98
      %p107 = scmp.eq.s32.totalorder %s22, 1
      %p108 = por %p106, %p107
      %p109 = scmp.ne.s32.totalorder %s98, %s99
      %p110 = scmp.eq.s32.totalorder %s22, 0
      %p111 = por %p109, %p110
      %p112 = scmp.ne.s32.totalorder %s98, %s99
      %p113 = scmp.eq.s32.totalorder %s23, 1
      %p114 = por %p112, %p113
      %p116 = scmp.ne.s32.totalorder %s99, %s115
      %p117 = scmp.eq.s32.totalorder %s23, 0
      %p118 = por %p116, %p117
      %p119 = scmp.le.s32.totalorder 1, %s17
      %p120 = scmp.lt.s32.totalorder %s17, 3
      %p121 = pnand %p119, %p120
      %p122 = pneg %p121
      // Predicated region
      $region9: #{tpu_custom_call.1} parent=5 // pred_check
        _
      $region10: #{tpu_custom_call.1} parent=5 // pred_check_branch
        %124 = sbr.rel (%p121) target = $region12
      $region11: #{tpu_custom_call.1} parent=5 // pred_region
        %s125 = ssub.s32 %s17, 1
        // Predicated region
        $region13: #{tpu_custom_call.1} parent=11 // pred_check
          %p126 = pneg %p64
        $region14: #{tpu_custom_call.1} parent=11 // pred_check_branch
          %128 = sbr.rel (%p126) target = $region16
        $region15: #{tpu_custom_call.1} parent=11 // pred_region
          %s130 = ssub.s32 16, 16
          %131 = vsyncadd [#allocation7], %s130
          %s133 = sshll.u32 %s1, 4
          %s134 = int_to_ptr.vmem [resolvable:$true] %s133
          %136 = dma.vmem_to_smem %s134, 16, [#allocation8], [#allocation7]
        $region16: #{tpu_custom_call.1} parent=11 // pred_fallthru
          _
        // Predicated region
        $region17: #{tpu_custom_call.1} parent=11 // pred_check
          %p137 = pneg %p85
        $region18: #{tpu_custom_call.1} parent=11 // pred_check_branch
          %139 = sbr.rel (%p137) target = $region20
        $region19: #{tpu_custom_call.1} parent=11 // pred_region
          _
        $region20: #{tpu_custom_call.1} parent=11 // pred_fallthru
          _
      $region12: #{tpu_custom_call.1} parent=5 // pred_fallthru
        _
      %p140 = scmp.lt.s32.totalorder %s17, 2
      // Predicated region
      $region21: #{tpu_custom_call.1} parent=5 // pred_check
        %p141 = pneg %p140
      $region22: #{tpu_custom_call.1} parent=5 // pred_check_branch
        %143 = sbr.rel (%p141) target = $region24
      $region23: #{tpu_custom_call.1} parent=5 // pred_region
        // Predicated region
        $region25: #{tpu_custom_call.1} parent=23 // pred_check
          %p144 = pneg %p37
        $region26: #{tpu_custom_call.1} parent=23 // pred_check_branch
          %146 = sbr.rel (%p144) target = $region28
        $region27: #{tpu_custom_call.1} parent=23 // pred_region
          %s147 = sand.u32 %s27, 1
          %s148 = scalar_lea.sflag [#allocation5], %s147
          %s149 = sand.u32 %s27, 1
          %s150 = smul.addr %s149, 64
          %s151 = scalar_lea.vmem [#allocation4], %s150
          %s153 = ssub.s32 1024, 1024
          %154 = vsyncadd %s148, %s153
          %s155 = smul.addr %s17, 8
          %s156 = smul.addr %s155, 128
          %s157 = scalar_lea.hbm %s0, %s156
          %s158 = sshll.u32 %s151, 4
          %s159 = int_to_ptr.vmem [resolvable:$true] %s158
          %164 = dma.hbm_to_vmem [thread:$0]  %s157, 1024, %s159, %s148, 128, 128, 8
        $region28: #{tpu_custom_call.1} parent=23 // pred_fallthru
          _
      $region24: #{tpu_custom_call.1} parent=5 // pred_fallthru
        _
      %p165 = scmp.le.s32.totalorder 1, %s17
      %p166 = scmp.lt.s32.totalorder %s17, 3
      %p167 = pnand %p165, %p166
      %p168 = pneg %p167
      // Predicated region
      $region29: #{tpu_custom_call.1} parent=5 // pred_check
        _
      $region30: #{tpu_custom_call.1} parent=5 // pred_check_branch
        %170 = sbr.rel (%p167) target = $region32
      $region31: #{tpu_custom_call.1} parent=5 // pred_region
        %s171 = ssub.s32 %s17, 1
        %s172 = sand.u32 %s30, 1
        %s173 = scalar_lea.sflag [#allocation5], %s172
        %s174 = sand.u32 %s30, 1
        %s175 = smul.addr %s174, 64
        %s176 = scalar_lea.vmem [#allocation4], %s175
        // Predicated region
        $region33: #{tpu_custom_call.1} parent=31 // pred_check
          %p177 = pneg %p43
        $region34: #{tpu_custom_call.1} parent=31 // pred_check_branch
          %179 = sbr.rel (%p177) target = $region36
        $region35: #{tpu_custom_call.1} parent=31 // pred_region
          %180 = dma.done %s173, 1024
        $region36: #{tpu_custom_call.1} parent=31 // pred_fallthru
          _
        // Predicated region
        $region37: #{tpu_custom_call.1} parent=31 // pred_check
          %p181 = pneg %p64
        $region38: #{tpu_custom_call.1} parent=31 // pred_check_branch
          %183 = sbr.rel (%p181) target = $region40
        $region39: #{tpu_custom_call.1} parent=31 // pred_region
          %184 = dma.done [#allocation7], 16
        $region40: #{tpu_custom_call.1} parent=31 // pred_fallthru
          _
        %185 = sfence
        %s186 = sand.u32 %s30, 1
        %s187 = scalar_lea.sflag [#allocation5], %s186
        %s188 = sand.u32 %s30, 1
        %s189 = smul.addr %s188, 64
        %s190 = scalar_lea.vmem [#allocation4], %s189
        %p191 = pneg %p43
        %p192 = pneg %p40
        %p193 = pneg %p64
        %p194 = pneg %p61
        %p195 = pneg %p85
        %p196 = pneg %p82
        %p197 = pneg %p111
        %p198 = pneg %p108
        %s199 = sand.u32 %s98, 1
        %s200 = scalar_lea.sflag [#allocation6], %s199
        %s201 = sand.u32 %s98, 1
        %s202 = smul.addr %s201, 16
        %s203 = scalar_lea.vmem [#allocation9], %s202
        %v204 = vld [vmem:[%s176] sm:$0xff]
        %v205 = vld [vmem:[%s176 + $0x8] sm:$0xff]
        %s206 = scalar_lea.vmem %s176, 16 [#allocation4]
        %v207 = vld [vmem:[%s206] sm:$0xff]
        %v208 = vld [vmem:[%s206 + $0x8] sm:$0xff]
        %v209 = vadd.f32 %v204, %v207
        %v210 = vadd.f32 %v205, %v208
        %v211 = vmax.f32 %v204, %v207
        %v212 = vmax.f32 %v205, %v208
        %s213 = scalar_lea.vmem %s176, 32 [#allocation4]
        %v214 = vld [vmem:[%s213] sm:$0xff]
        %v215 = vld [vmem:[%s213 + $0x8] sm:$0xff]
        %v216 = vadd.f32 %v209, %v214
        %v217 = vadd.f32 %v210, %v215
        %v218 = vmax.f32 %v211, %v214
        %v219 = vmax.f32 %v212, %v215
        %s220 = scalar_lea.vmem %s176, 48 [#allocation4]
        %v221 = vld [vmem:[%s220] sm:$0xff]
        %v222 = vld [vmem:[%s220 + $0x8] sm:$0xff]
        %v223 = vadd.f32 %v216, %v221
        %v224 = vadd.f32 %v217, %v222
        %v225 = vmax.f32 %v218, %v221
        %v226 = vmax.f32 %v219, %v222
        %v227 = vmul.f32 %v223, 0.25
        %v228 = vmul.f32 %v224, 0.25
        %vm229 = vcmask 179200
        %230 = vst.msk [vmem:[#allocation2] sm:$0xff] %vm229, 0.0
        %231 = vst.msk [vmem:[#allocation2 + $0x8] sm:$0xff] %vm229, 0.0
        %vm232 = vcmask 177152
        %233 = vst.msk [vmem:[#allocation2 + $0x10] sm:$0x3f] %vm232, 0.0
        %234 = vst.msk [vmem:[#allocation2 + $0x18] sm:$0xff] %vm229, 0.0
        %235 = vst.msk [vmem:[#allocation2 + $0x20] sm:$0xff] %vm229, 0.0
        %236 = vst.msk [vmem:[#allocation2 + $0x28] sm:$0x3f] %vm232, 0.0
        %239 = vrot.lane.b32.xlu0 %v227, 3
        %v240 = vpop.permute.xlu0 %239
        %241 = vrot.lane.b32.xlu0 %v228, 3
        %v242 = vpop.permute.xlu0 %241
        %vm245 = vcmask 154648
        %246 = vst.msk [vmem:[#allocation2 + $0x3] sm:$0xff] %vm245, %v240
        %247 = vst.msk [vmem:[#allocation2 + $0xb] sm:$0xff] %vm245, %v242
        %250 = vrot.lane.b32.xlu0 %v225, 3
        %v251 = vpop.permute.xlu0 %250
        %252 = vrot.lane.b32.xlu0 %v226, 3
        %v253 = vpop.permute.xlu0 %252
        %s256 = scalar_lea.vmem [#allocation2], 24
        %257 = vst.msk [vmem:[%s256 + $0x3] sm:$0xff] %vm245, %v251
        %258 = vst.msk [vmem:[%s256 + $0xb] sm:$0xff] %vm245, %v253
        %s259 = sld [smem:[#allocation8]]
        %v260 = vld [vmem:[#allocation2] sm:$0xff]
        %v261 = vld [vmem:[#allocation2 + $0x8] sm:$0xff]
        %v262 = vstv %s259
        %v263 = vmul.f32 %v262, %v260
        %v264 = vmul.f32 %v262, %v261
        %v265 = vadd.f32 %v263, 0.0
        %v266 = vadd.f32 %v264, 0.0
        %s267 = sld [smem:[#allocation8 + $0x1]]
        %v268 = vstv %s267
        %v269 = vmul.f32 %v268, %v260
        %v270 = vmul.f32 %v268, %v261
        %273 = vrot.lane.b32.xlu0 %v269, 127
        %v274 = vpop.permute.xlu0 %273
        %275 = vrot.lane.b32.xlu0 %v270, 127
        %v276 = vpop.permute.xlu0 %275
        %v279 = vadd.f32 %v265, %v274
        %v280 = vadd.f32 %v266, %v276
        %s281 = sld [smem:[#allocation8 + $0x2]]
        %v282 = vstv %s281
        %v283 = vmul.f32 %v282, %v260
        %v284 = vmul.f32 %v282, %v261
        %287 = vrot.lane.b32.xlu0 %v283, 126
        %v288 = vpop.permute.xlu0 %287
        %289 = vrot.lane.b32.xlu0 %v284, 126
        %v290 = vpop.permute.xlu0 %289
        %v293 = vadd.f32 %v279, %v288
        %v294 = vadd.f32 %v280, %v290
        %s295 = sld [smem:[#allocation8 + $0x3]]
        %v296 = vstv %s295
        %v297 = vmul.f32 %v296, %v260
        %v298 = vmul.f32 %v296, %v261
        %301 = vrot.lane.b32.xlu0 %v297, 125
        %v302 = vpop.permute.xlu0 %301
        %303 = vrot.lane.b32.xlu0 %v298, 125
        %v304 = vpop.permute.xlu0 %303
        %v307 = vadd.f32 %v293, %v302
        %v308 = vadd.f32 %v294, %v304
        %s309 = sld [smem:[#allocation8 + $0x4]]
        %v310 = vstv %s309
        %v311 = vmul.f32 %v310, %v260
        %v312 = vmul.f32 %v310, %v261
        %315 = vrot.lane.b32.xlu0 %v311, 124
        %v316 = vpop.permute.xlu0 %315
        %317 = vrot.lane.b32.xlu0 %v312, 124
        %v318 = vpop.permute.xlu0 %317
        %v321 = vadd.f32 %v307, %v316
        %v322 = vadd.f32 %v308, %v318
        %s323 = sld [smem:[#allocation8 + $0x5]]
        %v324 = vstv %s323
        %v325 = vmul.f32 %v324, %v260
        %v326 = vmul.f32 %v324, %v261
        %329 = vrot.lane.b32.xlu0 %v325, 123
        %v330 = vpop.permute.xlu0 %329
        %331 = vrot.lane.b32.xlu0 %v326, 123
        %v332 = vpop.permute.xlu0 %331
        %v335 = vadd.f32 %v321, %v330
        %v336 = vadd.f32 %v322, %v332
        %s337 = sld [smem:[#allocation8 + $0x6]]
        %v338 = vstv %s337
        %v339 = vmul.f32 %v338, %v260
        %v340 = vmul.f32 %v338, %v261
        %343 = vrot.lane.b32.xlu0 %v339, 122
        %v344 = vpop.permute.xlu0 %343
        %345 = vrot.lane.b32.xlu0 %v340, 122
        %v346 = vpop.permute.xlu0 %345
        %v349 = vadd.f32 %v335, %v344
        %v350 = vadd.f32 %v336, %v346
        %s351 = sld [smem:[#allocation8 + $0x7]]
        %v352 = vld [vmem:[#allocation2 + $0x1] sm:$0xff]
        %v353 = vld [vmem:[#allocation2 + $0x9] sm:$0xff]
        %v354 = vstv %s351
        %v355 = vmul.f32 %v354, %v352
        %v356 = vmul.f32 %v354, %v353
        %v357 = vadd.f32 %v349, %v355
        %v358 = vadd.f32 %v350, %v356
        %s359 = sld [smem:[#allocation8 + $0x8]]
        %v360 = vstv %s359
        %v361 = vmul.f32 %v360, %v352
        %v362 = vmul.f32 %v360, %v353
        %365 = vrot.lane.b32.xlu0 %v361, 127
        %v366 = vpop.permute.xlu0 %365
        %367 = vrot.lane.b32.xlu0 %v362, 127
        %v368 = vpop.permute.xlu0 %367
        %v371 = vadd.f32 %v357, %v366
        %v372 = vadd.f32 %v358, %v368
        %s373 = sld [smem:[#allocation8 + $0x9]]
        %v374 = vstv %s373
        %v375 = vmul.f32 %v374, %v352
        %v376 = vmul.f32 %v374, %v353
        %379 = vrot.lane.b32.xlu0 %v375, 126
        %v380 = vpop.permute.xlu0 %379
        %381 = vrot.lane.b32.xlu0 %v376, 126
        %v382 = vpop.permute.xlu0 %381
        %v385 = vadd.f32 %v371, %v380
        %v386 = vadd.f32 %v372, %v382
        %s387 = sld [smem:[#allocation8 + $0xa]]
        %v388 = vstv %s387
        %v389 = vmul.f32 %v388, %v352
        %v390 = vmul.f32 %v388, %v353
        %393 = vrot.lane.b32.xlu0 %v389, 125
        %v394 = vpop.permute.xlu0 %393
        %395 = vrot.lane.b32.xlu0 %v390, 125
        %v396 = vpop.permute.xlu0 %395
        %v399 = vadd.f32 %v385, %v394
        %v400 = vadd.f32 %v386, %v396
        %s401 = sld [smem:[#allocation8 + $0xb]]
        %v402 = vstv %s401
        %v403 = vmul.f32 %v402, %v352
        %v404 = vmul.f32 %v402, %v353
        %407 = vrot.lane.b32.xlu0 %v403, 124
        %v408 = vpop.permute.xlu0 %407
        %409 = vrot.lane.b32.xlu0 %v404, 124
        %v410 = vpop.permute.xlu0 %409
        %v413 = vadd.f32 %v399, %v408
        %v414 = vadd.f32 %v400, %v410
        %s415 = sld [smem:[#allocation8 + $0xc]]
        %v416 = vstv %s415
        %v417 = vmul.f32 %v416, %v352
        %v418 = vmul.f32 %v416, %v353
        %421 = vrot.lane.b32.xlu0 %v417, 123
        %v422 = vpop.permute.xlu0 %421
        %423 = vrot.lane.b32.xlu0 %v418, 123
        %v424 = vpop.permute.xlu0 %423
        %v427 = vadd.f32 %v413, %v422
        %v428 = vadd.f32 %v414, %v424
        %s429 = sld [smem:[#allocation8 + $0xd]]
        %v430 = vstv %s429
        %v431 = vmul.f32 %v430, %v352
        %v432 = vmul.f32 %v430, %v353
        %435 = vrot.lane.b32.xlu0 %v431, 122
        %v436 = vpop.permute.xlu0 %435
        %437 = vrot.lane.b32.xlu0 %v432, 122
        %v438 = vpop.permute.xlu0 %437
        %v441 = vadd.f32 %v427, %v436
        %v442 = vadd.f32 %v428, %v438
        %s443 = sld [smem:[#allocation8 + $0xe]]
        %v444 = vld [vmem:[#allocation2 + $0x2] sm:$0xff]
        %v445 = vld [vmem:[#allocation2 + $0xa] sm:$0xff]
        %v446 = vstv %s443
        %v447 = vmul.f32 %v446, %v444
        %v448 = vmul.f32 %v446, %v445
        %v449 = vadd.f32 %v441, %v447
        %v450 = vadd.f32 %v442, %v448
        %s451 = sld [smem:[#allocation8 + $0xf]]
        %v452 = vstv %s451
        %v453 = vmul.f32 %v452, %v444
        %v454 = vmul.f32 %v452, %v445
        %457 = vrot.lane.b32.xlu0 %v453, 127
        %v458 = vpop.permute.xlu0 %457
        %459 = vrot.lane.b32.xlu0 %v454, 127
        %v460 = vpop.permute.xlu0 %459
        %v463 = vadd.f32 %v449, %v458
        %v464 = vadd.f32 %v450, %v460
        %s465 = sld [smem:[#allocation8 + $0x10]]
        %v466 = vstv %s465
        %v467 = vmul.f32 %v466, %v444
        %v468 = vmul.f32 %v466, %v445
        %471 = vrot.lane.b32.xlu0 %v467, 126
        %v472 = vpop.permute.xlu0 %471
        %473 = vrot.lane.b32.xlu0 %v468, 126
        %v474 = vpop.permute.xlu0 %473
        %v477 = vadd.f32 %v463, %v472
        %v478 = vadd.f32 %v464, %v474
        %s479 = sld [smem:[#allocation8 + $0x11]]
        %v480 = vstv %s479
        %v481 = vmul.f32 %v480, %v444
        %v482 = vmul.f32 %v480, %v445
        %485 = vrot.lane.b32.xlu0 %v481, 125
        %v486 = vpop.permute.xlu0 %485
        %487 = vrot.lane.b32.xlu0 %v482, 125
        %v488 = vpop.permute.xlu0 %487
        %v491 = vadd.f32 %v477, %v486
        %v492 = vadd.f32 %v478, %v488
        %s493 = sld [smem:[#allocation8 + $0x12]]
        %v494 = vstv %s493
        %v495 = vmul.f32 %v494, %v444
        %v496 = vmul.f32 %v494, %v445
        %499 = vrot.lane.b32.xlu0 %v495, 124
        %v500 = vpop.permute.xlu0 %499
        %501 = vrot.lane.b32.xlu0 %v496, 124
        %v502 = vpop.permute.xlu0 %501
        %v505 = vadd.f32 %v491, %v500
        %v506 = vadd.f32 %v492, %v502
        %s507 = sld [smem:[#allocation8 + $0x13]]
        %v508 = vstv %s507
        %v509 = vmul.f32 %v508, %v444
        %v510 = vmul.f32 %v508, %v445
        %513 = vrot.lane.b32.xlu0 %v509, 123
        %v514 = vpop.permute.xlu0 %513
        %515 = vrot.lane.b32.xlu0 %v510, 123
        %v516 = vpop.permute.xlu0 %515
        %v519 = vadd.f32 %v505, %v514
        %v520 = vadd.f32 %v506, %v516
        %s521 = sld [smem:[#allocation8 + $0x14]]
        %v522 = vstv %s521
        %v523 = vmul.f32 %v522, %v444
        %v524 = vmul.f32 %v522, %v445
        %527 = vrot.lane.b32.xlu0 %v523, 122
        %v528 = vpop.permute.xlu0 %527
        %529 = vrot.lane.b32.xlu0 %v524, 122
        %v530 = vpop.permute.xlu0 %529
        %v533 = vadd.f32 %v519, %v528
        %v534 = vadd.f32 %v520, %v530
        %s535 = sld [smem:[#allocation8 + $0x15]]
        %v536 = vld [vmem:[#allocation2 + $0x3] sm:$0xff]
        %v537 = vld [vmem:[#allocation2 + $0xb] sm:$0xff]
        %v538 = vstv %s535
        %v539 = vmul.f32 %v538, %v536
        %v540 = vmul.f32 %v538, %v537
        %v541 = vadd.f32 %v533, %v539
        %v542 = vadd.f32 %v534, %v540
        %s543 = sld [smem:[#allocation8 + $0x16]]
        %v544 = vstv %s543
        %v545 = vmul.f32 %v544, %v536
        %v546 = vmul.f32 %v544, %v537
        %549 = vrot.lane.b32.xlu0 %v545, 127
        %v550 = vpop.permute.xlu0 %549
        %551 = vrot.lane.b32.xlu0 %v546, 127
        %v552 = vpop.permute.xlu0 %551
        %v555 = vadd.f32 %v541, %v550
        %v556 = vadd.f32 %v542, %v552
        %s557 = sld [smem:[#allocation8 + $0x17]]
        %v558 = vstv %s557
        %v559 = vmul.f32 %v558, %v536
        %v560 = vmul.f32 %v558, %v537
        %563 = vrot.lane.b32.xlu0 %v559, 126
        %v564 = vpop.permute.xlu0 %563
        %565 = vrot.lane.b32.xlu0 %v560, 126
        %v566 = vpop.permute.xlu0 %565
        %v569 = vadd.f32 %v555, %v564
        %v570 = vadd.f32 %v556, %v566
        %s571 = sld [smem:[#allocation8 + $0x18]]
        %v572 = vstv %s571
        %v573 = vmul.f32 %v572, %v536
        %v574 = vmul.f32 %v572, %v537
        %577 = vrot.lane.b32.xlu0 %v573, 125
        %v578 = vpop.permute.xlu0 %577
        %579 = vrot.lane.b32.xlu0 %v574, 125
        %v580 = vpop.permute.xlu0 %579
        %v583 = vadd.f32 %v569, %v578
        %v584 = vadd.f32 %v570, %v580
        %s585 = sld [smem:[#allocation8 + $0x19]]
        %v586 = vstv %s585
        %v587 = vmul.f32 %v586, %v536
        %v588 = vmul.f32 %v586, %v537
        %591 = vrot.lane.b32.xlu0 %v587, 124
        %v592 = vpop.permute.xlu0 %591
        %593 = vrot.lane.b32.xlu0 %v588, 124
        %v594 = vpop.permute.xlu0 %593
        %v597 = vadd.f32 %v583, %v592
        %v598 = vadd.f32 %v584, %v594
        %s599 = sld [smem:[#allocation8 + $0x1a]]
        %v600 = vstv %s599
        %v601 = vmul.f32 %v600, %v536
        %v602 = vmul.f32 %v600, %v537
        %605 = vrot.lane.b32.xlu0 %v601, 123
        %v606 = vpop.permute.xlu0 %605
        %607 = vrot.lane.b32.xlu0 %v602, 123
        %v608 = vpop.permute.xlu0 %607
        %v611 = vadd.f32 %v597, %v606
        %v612 = vadd.f32 %v598, %v608
        %s613 = sld [smem:[#allocation8 + $0x1b]]
        %v614 = vstv %s613
        %v615 = vmul.f32 %v614, %v536
        %v616 = vmul.f32 %v614, %v537
        %619 = vrot.lane.b32.xlu0 %v615, 122
        %v620 = vpop.permute.xlu0 %619
        %621 = vrot.lane.b32.xlu0 %v616, 122
        %v622 = vpop.permute.xlu0 %621
        %v625 = vadd.f32 %v611, %v620
        %v626 = vadd.f32 %v612, %v622
        %s627 = sld [smem:[#allocation8 + $0x1c]]
        %v628 = vld [vmem:[#allocation2 + $0x4] sm:$0xff]
        %v629 = vld [vmem:[#allocation2 + $0xc] sm:$0xff]
        %v630 = vstv %s627
        %v631 = vmul.f32 %v630, %v628
        %v632 = vmul.f32 %v630, %v629
        %v633 = vadd.f32 %v625, %v631
        %v634 = vadd.f32 %v626, %v632
        %s635 = sld [smem:[#allocation8 + $0x1d]]
        %v636 = vstv %s635
        %v637 = vmul.f32 %v636, %v628
        %v638 = vmul.f32 %v636, %v629
        %641 = vrot.lane.b32.xlu0 %v637, 127
        %v642 = vpop.permute.xlu0 %641
        %643 = vrot.lane.b32.xlu0 %v638, 127
        %v644 = vpop.permute.xlu0 %643
        %v647 = vadd.f32 %v633, %v642
        %v648 = vadd.f32 %v634, %v644
        %s649 = sld [smem:[#allocation8 + $0x1e]]
        %v650 = vstv %s649
        %v651 = vmul.f32 %v650, %v628
        %v652 = vmul.f32 %v650, %v629
        %655 = vrot.lane.b32.xlu0 %v651, 126
        %v656 = vpop.permute.xlu0 %655
        %657 = vrot.lane.b32.xlu0 %v652, 126
        %v658 = vpop.permute.xlu0 %657
        %v661 = vadd.f32 %v647, %v656
        %v662 = vadd.f32 %v648, %v658
        %s663 = sld [smem:[#allocation8 + $0x1f]]
        %v664 = vstv %s663
        %v665 = vmul.f32 %v664, %v628
        %v666 = vmul.f32 %v664, %v629
        %669 = vrot.lane.b32.xlu0 %v665, 125
        %v670 = vpop.permute.xlu0 %669
        %671 = vrot.lane.b32.xlu0 %v666, 125
        %v672 = vpop.permute.xlu0 %671
        %v675 = vadd.f32 %v661, %v670
        %v676 = vadd.f32 %v662, %v672
        %s677 = sld [smem:[#allocation8 + $0x20]]
        %v678 = vstv %s677
        %v679 = vmul.f32 %v678, %v628
        %v680 = vmul.f32 %v678, %v629
        %683 = vrot.lane.b32.xlu0 %v679, 124
        %v684 = vpop.permute.xlu0 %683
        %685 = vrot.lane.b32.xlu0 %v680, 124
        %v686 = vpop.permute.xlu0 %685
        %v689 = vadd.f32 %v675, %v684
        %v690 = vadd.f32 %v676, %v686
        %s691 = sld [smem:[#allocation8 + $0x21]]
        %v692 = vstv %s691
        %v693 = vmul.f32 %v692, %v628
        %v694 = vmul.f32 %v692, %v629
        %697 = vrot.lane.b32.xlu0 %v693, 123
        %v698 = vpop.permute.xlu0 %697
        %699 = vrot.lane.b32.xlu0 %v694, 123
        %v700 = vpop.permute.xlu0 %699
        %v703 = vadd.f32 %v689, %v698
        %v704 = vadd.f32 %v690, %v700
        %s705 = sld [smem:[#allocation8 + $0x22]]
        %v706 = vstv %s705
        %v707 = vmul.f32 %v706, %v628
        %v708 = vmul.f32 %v706, %v629
        %711 = vrot.lane.b32.xlu0 %v707, 122
        %v712 = vpop.permute.xlu0 %711
        %713 = vrot.lane.b32.xlu0 %v708, 122
        %v714 = vpop.permute.xlu0 %713
        %v717 = vadd.f32 %v703, %v712
        %v718 = vadd.f32 %v704, %v714
        %s719 = sld [smem:[#allocation8 + $0x23]]
        %v720 = vld [vmem:[#allocation2 + $0x5] sm:$0xff]
        %v721 = vld [vmem:[#allocation2 + $0xd] sm:$0xff]
        %v722 = vstv %s719
        %v723 = vmul.f32 %v722, %v720
        %v724 = vmul.f32 %v722, %v721
        %v725 = vadd.f32 %v717, %v723
        %v726 = vadd.f32 %v718, %v724
        %s727 = sld [smem:[#allocation8 + $0x24]]
        %v728 = vstv %s727
        %v729 = vmul.f32 %v728, %v720
        %v730 = vmul.f32 %v728, %v721
        %733 = vrot.lane.b32.xlu0 %v729, 127
        %v734 = vpop.permute.xlu0 %733
        %735 = vrot.lane.b32.xlu0 %v730, 127
        %v736 = vpop.permute.xlu0 %735
        %v739 = vadd.f32 %v725, %v734
        %v740 = vadd.f32 %v726, %v736
        %s741 = sld [smem:[#allocation8 + $0x25]]
        %v742 = vstv %s741
        %v743 = vmul.f32 %v742, %v720
        %v744 = vmul.f32 %v742, %v721
        %747 = vrot.lane.b32.xlu0 %v743, 126
        %v748 = vpop.permute.xlu0 %747
        %749 = vrot.lane.b32.xlu0 %v744, 126
        %v750 = vpop.permute.xlu0 %749
        %v753 = vadd.f32 %v739, %v748
        %v754 = vadd.f32 %v740, %v750
        %s755 = sld [smem:[#allocation8 + $0x26]]
        %v756 = vstv %s755
        %v757 = vmul.f32 %v756, %v720
        %v758 = vmul.f32 %v756, %v721
        %761 = vrot.lane.b32.xlu0 %v757, 125
        %v762 = vpop.permute.xlu0 %761
        %763 = vrot.lane.b32.xlu0 %v758, 125
        %v764 = vpop.permute.xlu0 %763
        %v767 = vadd.f32 %v753, %v762
        %v768 = vadd.f32 %v754, %v764
        %s769 = sld [smem:[#allocation8 + $0x27]]
        %v770 = vstv %s769
        %v771 = vmul.f32 %v770, %v720
        %v772 = vmul.f32 %v770, %v721
        %775 = vrot.lane.b32.xlu0 %v771, 124
        %v776 = vpop.permute.xlu0 %775
        %777 = vrot.lane.b32.xlu0 %v772, 124
        %v778 = vpop.permute.xlu0 %777
        %v781 = vadd.f32 %v767, %v776
        %v782 = vadd.f32 %v768, %v778
        %s783 = sld [smem:[#allocation8 + $0x28]]
        %v784 = vstv %s783
        %v785 = vmul.f32 %v784, %v720
        %v786 = vmul.f32 %v784, %v721
        %789 = vrot.lane.b32.xlu0 %v785, 123
        %v790 = vpop.permute.xlu0 %789
        %791 = vrot.lane.b32.xlu0 %v786, 123
        %v792 = vpop.permute.xlu0 %791
        %v795 = vadd.f32 %v781, %v790
        %v796 = vadd.f32 %v782, %v792
        %s797 = sld [smem:[#allocation8 + $0x29]]
        %v798 = vstv %s797
        %v799 = vmul.f32 %v798, %v720
        %v800 = vmul.f32 %v798, %v721
        %803 = vrot.lane.b32.xlu0 %v799, 122
        %v804 = vpop.permute.xlu0 %803
        %805 = vrot.lane.b32.xlu0 %v800, 122
        %v806 = vpop.permute.xlu0 %805
        %v809 = vadd.f32 %v795, %v804
        %v810 = vadd.f32 %v796, %v806
        %s811 = sld [smem:[#allocation8 + $0x2a]]
        %v812 = vld [vmem:[#allocation2 + $0x6] sm:$0xff]
        %v813 = vld [vmem:[#allocation2 + $0xe] sm:$0xff]
        %v814 = vstv %s811
        %v815 = vmul.f32 %v814, %v812
        %v816 = vmul.f32 %v814, %v813
        %v817 = vadd.f32 %v809, %v815
        %v818 = vadd.f32 %v810, %v816
        %s819 = sld [smem:[#allocation8 + $0x2b]]
        %v820 = vstv %s819
        %v821 = vmul.f32 %v820, %v812
        %v822 = vmul.f32 %v820, %v813
        %825 = vrot.lane.b32.xlu0 %v821, 127
        %v826 = vpop.permute.xlu0 %825
        %827 = vrot.lane.b32.xlu0 %v822, 127
        %v828 = vpop.permute.xlu0 %827
        %v831 = vadd.f32 %v817, %v826
        %v832 = vadd.f32 %v818, %v828
        %s833 = sld [smem:[#allocation8 + $0x2c]]
        %v834 = vstv %s833
        %v835 = vmul.f32 %v834, %v812
        %v836 = vmul.f32 %v834, %v813
        %839 = vrot.lane.b32.xlu0 %v835, 126
        %v840 = vpop.permute.xlu0 %839
        %841 = vrot.lane.b32.xlu0 %v836, 126
        %v842 = vpop.permute.xlu0 %841
        %v845 = vadd.f32 %v831, %v840
        %v846 = vadd.f32 %v832, %v842
        %s847 = sld [smem:[#allocation8 + $0x2d]]
        %v848 = vstv %s847
        %v849 = vmul.f32 %v848, %v812
        %v850 = vmul.f32 %v848, %v813
        %853 = vrot.lane.b32.xlu0 %v849, 125
        %v854 = vpop.permute.xlu0 %853
        %855 = vrot.lane.b32.xlu0 %v850, 125
        %v856 = vpop.permute.xlu0 %855
        %v859 = vadd.f32 %v845, %v854
        %v860 = vadd.f32 %v846, %v856
        %s861 = sld [smem:[#allocation8 + $0x2e]]
        %v862 = vstv %s861
        %v863 = vmul.f32 %v862, %v812
        %v864 = vmul.f32 %v862, %v813
        %867 = vrot.lane.b32.xlu0 %v863, 124
        %v868 = vpop.permute.xlu0 %867
        %869 = vrot.lane.b32.xlu0 %v864, 124
        %v870 = vpop.permute.xlu0 %869
        %v873 = vadd.f32 %v859, %v868
        %v874 = vadd.f32 %v860, %v870
        %s875 = sld [smem:[#allocation8 + $0x2f]]
        %v876 = vstv %s875
        %v877 = vmul.f32 %v876, %v812
        %v878 = vmul.f32 %v876, %v813
        %881 = vrot.lane.b32.xlu0 %v877, 123
        %v882 = vpop.permute.xlu0 %881
        %883 = vrot.lane.b32.xlu0 %v878, 123
        %v884 = vpop.permute.xlu0 %883
        %v887 = vadd.f32 %v873, %v882
        %v888 = vadd.f32 %v874, %v884
        %s889 = sld [smem:[#allocation8 + $0x30]]
        %v890 = vstv %s889
        %v891 = vmul.f32 %v890, %v812
        %v892 = vmul.f32 %v890, %v813
        %895 = vrot.lane.b32.xlu0 %v891, 122
        %v896 = vpop.permute.xlu0 %895
        %897 = vrot.lane.b32.xlu0 %v892, 122
        %v898 = vpop.permute.xlu0 %897
        %v901 = vadd.f32 %v887, %v896
        %v902 = vadd.f32 %v888, %v898
        %s903 = sld [smem:[#allocation8 + $0x31]]
        %v904 = vld [vmem:[%s256] sm:$0xff]
        %v905 = vld [vmem:[%s256 + $0x8] sm:$0xff]
        %v906 = vstv %s903
        %v907 = vmul.f32 %v906, %v904
        %v908 = vmul.f32 %v906, %v905
        %v909 = vadd.f32 %v901, %v907
        %v910 = vadd.f32 %v902, %v908
        %s911 = sld [smem:[#allocation8 + $0x32]]
        %v912 = vstv %s911
        %v913 = vmul.f32 %v912, %v904
        %v914 = vmul.f32 %v912, %v905
        %917 = vrot.lane.b32.xlu0 %v913, 127
        %v918 = vpop.permute.xlu0 %917
        %919 = vrot.lane.b32.xlu0 %v914, 127
        %v920 = vpop.permute.xlu0 %919
        %v923 = vadd.f32 %v909, %v918
        %v924 = vadd.f32 %v910, %v920
        %s925 = sld [smem:[#allocation8 + $0x33]]
        %v926 = vstv %s925
        %v927 = vmul.f32 %v926, %v904
        %v928 = vmul.f32 %v926, %v905
        %931 = vrot.lane.b32.xlu0 %v927, 126
        %v932 = vpop.permute.xlu0 %931
        %933 = vrot.lane.b32.xlu0 %v928, 126
        %v934 = vpop.permute.xlu0 %933
        %v937 = vadd.f32 %v923, %v932
        %v938 = vadd.f32 %v924, %v934
        %s939 = sld [smem:[#allocation8 + $0x34]]
        %v940 = vstv %s939
        %v941 = vmul.f32 %v940, %v904
        %v942 = vmul.f32 %v940, %v905
        %945 = vrot.lane.b32.xlu0 %v941, 125
        %v946 = vpop.permute.xlu0 %945
        %947 = vrot.lane.b32.xlu0 %v942, 125
        %v948 = vpop.permute.xlu0 %947
        %v951 = vadd.f32 %v937, %v946
        %v952 = vadd.f32 %v938, %v948
        %s953 = sld [smem:[#allocation8 + $0x35]]
        %v954 = vstv %s953
        %v955 = vmul.f32 %v954, %v904
        %v956 = vmul.f32 %v954, %v905
        %959 = vrot.lane.b32.xlu0 %v955, 124
        %v960 = vpop.permute.xlu0 %959
        %961 = vrot.lane.b32.xlu0 %v956, 124
        %v962 = vpop.permute.xlu0 %961
        %v965 = vadd.f32 %v951, %v960
        %v966 = vadd.f32 %v952, %v962
        %s967 = sld [smem:[#allocation8 + $0x36]]
        %v968 = vstv %s967
        %v969 = vmul.f32 %v968, %v904
        %v970 = vmul.f32 %v968, %v905
        %973 = vrot.lane.b32.xlu0 %v969, 123
        %v974 = vpop.permute.xlu0 %973
        %975 = vrot.lane.b32.xlu0 %v970, 123
        %v976 = vpop.permute.xlu0 %975
        %v979 = vadd.f32 %v965, %v974
        %v980 = vadd.f32 %v966, %v976
        %s981 = sld [smem:[#allocation8 + $0x37]]
        %v982 = vstv %s981
        %v983 = vmul.f32 %v982, %v904
        %v984 = vmul.f32 %v982, %v905
        %987 = vrot.lane.b32.xlu0 %v983, 122
        %v988 = vpop.permute.xlu0 %987
        %989 = vrot.lane.b32.xlu0 %v984, 122
        %v990 = vpop.permute.xlu0 %989
        %v993 = vadd.f32 %v979, %v988
        %v994 = vadd.f32 %v980, %v990
        %s995 = sld [smem:[#allocation8 + $0x38]]
        %v996 = vld [vmem:[%s256 + $0x1] sm:$0xff]
        %v997 = vld [vmem:[%s256 + $0x9] sm:$0xff]
        %v998 = vstv %s995
        %v999 = vmul.f32 %v998, %v996
        %v1000 = vmul.f32 %v998, %v997
        %v1001 = vadd.f32 %v993, %v999
        %v1002 = vadd.f32 %v994, %v1000
        %s1003 = sld [smem:[#allocation8 + $0x39]]
        %v1004 = vstv %s1003
        %v1005 = vmul.f32 %v1004, %v996
        %v1006 = vmul.f32 %v1004, %v997
        %1009 = vrot.lane.b32.xlu0 %v1005, 127
        %v1010 = vpop.permute.xlu0 %1009
        %1011 = vrot.lane.b32.xlu0 %v1006, 127
        %v1012 = vpop.permute.xlu0 %1011
        %v1015 = vadd.f32 %v1001, %v1010
        %v1016 = vadd.f32 %v1002, %v1012
        %s1017 = sld [smem:[#allocation8 + $0x3a]]
        %v1018 = vstv %s1017
        %v1019 = vmul.f32 %v1018, %v996
        %v1020 = vmul.f32 %v1018, %v997
        %1023 = vrot.lane.b32.xlu0 %v1019, 126
        %v1024 = vpop.permute.xlu0 %1023
        %1025 = vrot.lane.b32.xlu0 %v1020, 126
        %v1026 = vpop.permute.xlu0 %1025
        %v1029 = vadd.f32 %v1015, %v1024
        %v1030 = vadd.f32 %v1016, %v1026
        %s1031 = sld [smem:[#allocation8 + $0x3b]]
        %v1032 = vstv %s1031
        %v1033 = vmul.f32 %v1032, %v996
        %v1034 = vmul.f32 %v1032, %v997
        %1037 = vrot.lane.b32.xlu0 %v1033, 125
        %v1038 = vpop.permute.xlu0 %1037
        %1039 = vrot.lane.b32.xlu0 %v1034, 125
        %v1040 = vpop.permute.xlu0 %1039
        %v1043 = vadd.f32 %v1029, %v1038
        %v1044 = vadd.f32 %v1030, %v1040
        %s1045 = sld [smem:[#allocation8 + $0x3c]]
        %v1046 = vstv %s1045
        %v1047 = vmul.f32 %v1046, %v996
        %v1048 = vmul.f32 %v1046, %v997
        %1051 = vrot.lane.b32.xlu0 %v1047, 124
        %v1052 = vpop.permute.xlu0 %1051
        %1053 = vrot.lane.b32.xlu0 %v1048, 124
        %v1054 = vpop.permute.xlu0 %1053
        %v1057 = vadd.f32 %v1043, %v1052
        %v1058 = vadd.f32 %v1044, %v1054
        %s1059 = sld [smem:[#allocation8 + $0x3d]]
        %v1060 = vstv %s1059
        %v1061 = vmul.f32 %v1060, %v996
        %v1062 = vmul.f32 %v1060, %v997
        %1065 = vrot.lane.b32.xlu0 %v1061, 123
        %v1066 = vpop.permute.xlu0 %1065
        %1067 = vrot.lane.b32.xlu0 %v1062, 123
        %v1068 = vpop.permute.xlu0 %1067
        %v1071 = vadd.f32 %v1057, %v1066
        %v1072 = vadd.f32 %v1058, %v1068
        %s1073 = sld [smem:[#allocation8 + $0x3e]]
        %v1074 = vstv %s1073
        %v1075 = vmul.f32 %v1074, %v996
        %v1076 = vmul.f32 %v1074, %v997
        %1079 = vrot.lane.b32.xlu0 %v1075, 122
        %v1080 = vpop.permute.xlu0 %1079
        %1081 = vrot.lane.b32.xlu0 %v1076, 122
        %v1082 = vpop.permute.xlu0 %1081
        %v1085 = vadd.f32 %v1071, %v1080
        %v1086 = vadd.f32 %v1072, %v1082
        %s1087 = sld [smem:[#allocation8 + $0x3f]]
        %v1088 = vld [vmem:[%s256 + $0x2] sm:$0xff]
        %v1089 = vld [vmem:[%s256 + $0xa] sm:$0xff]
        %v1090 = vstv %s1087
        %v1091 = vmul.f32 %v1090, %v1088
        %v1092 = vmul.f32 %v1090, %v1089
        %v1093 = vadd.f32 %v1085, %v1091
        %v1094 = vadd.f32 %v1086, %v1092
        %s1095 = sld [smem:[#allocation8 + $0x40]]
        %v1096 = vstv %s1095
        %v1097 = vmul.f32 %v1096, %v1088
        %v1098 = vmul.f32 %v1096, %v1089
        %1101 = vrot.lane.b32.xlu0 %v1097, 127
        %v1102 = vpop.permute.xlu0 %1101
        %1103 = vrot.lane.b32.xlu0 %v1098, 127
        %v1104 = vpop.permute.xlu0 %1103
        %v1107 = vadd.f32 %v1093, %v1102
        %v1108 = vadd.f32 %v1094, %v1104
        %s1109 = sld [smem:[#allocation8 + $0x41]]
        %v1110 = vstv %s1109
        %v1111 = vmul.f32 %v1110, %v1088
        %v1112 = vmul.f32 %v1110, %v1089
        %1115 = vrot.lane.b32.xlu0 %v1111, 126
        %v1116 = vpop.permute.xlu0 %1115
        %1117 = vrot.lane.b32.xlu0 %v1112, 126
        %v1118 = vpop.permute.xlu0 %1117
        %v1121 = vadd.f32 %v1107, %v1116
        %v1122 = vadd.f32 %v1108, %v1118
        %s1123 = sld [smem:[#allocation8 + $0x42]]
        %v1124 = vstv %s1123
        %v1125 = vmul.f32 %v1124, %v1088
        %v1126 = vmul.f32 %v1124, %v1089
        %1129 = vrot.lane.b32.xlu0 %v1125, 125
        %v1130 = vpop.permute.xlu0 %1129
        %1131 = vrot.lane.b32.xlu0 %v1126, 125
        %v1132 = vpop.permute.xlu0 %1131
        %v1135 = vadd.f32 %v1121, %v1130
        %v1136 = vadd.f32 %v1122, %v1132
        %s1137 = sld [smem:[#allocation8 + $0x43]]
        %v1138 = vstv %s1137
        %v1139 = vmul.f32 %v1138, %v1088
        %v1140 = vmul.f32 %v1138, %v1089
        %1143 = vrot.lane.b32.xlu0 %v1139, 124
        %v1144 = vpop.permute.xlu0 %1143
        %1145 = vrot.lane.b32.xlu0 %v1140, 124
        %v1146 = vpop.permute.xlu0 %1145
        %v1149 = vadd.f32 %v1135, %v1144
        %v1150 = vadd.f32 %v1136, %v1146
        %s1151 = sld [smem:[#allocation8 + $0x44]]
        %v1152 = vstv %s1151
        %v1153 = vmul.f32 %v1152, %v1088
        %v1154 = vmul.f32 %v1152, %v1089
        %1157 = vrot.lane.b32.xlu0 %v1153, 123
        %v1158 = vpop.permute.xlu0 %1157
        %1159 = vrot.lane.b32.xlu0 %v1154, 123
        %v1160 = vpop.permute.xlu0 %1159
        %v1163 = vadd.f32 %v1149, %v1158
        %v1164 = vadd.f32 %v1150, %v1160
        %s1165 = sld [smem:[#allocation8 + $0x45]]
        %v1166 = vstv %s1165
        %v1167 = vmul.f32 %v1166, %v1088
        %v1168 = vmul.f32 %v1166, %v1089
        %1171 = vrot.lane.b32.xlu0 %v1167, 122
        %v1172 = vpop.permute.xlu0 %1171
        %1173 = vrot.lane.b32.xlu0 %v1168, 122
        %v1174 = vpop.permute.xlu0 %1173
        %v1177 = vadd.f32 %v1163, %v1172
        %v1178 = vadd.f32 %v1164, %v1174
        %s1179 = sld [smem:[#allocation8 + $0x46]]
        %v1180 = vld [vmem:[%s256 + $0x3] sm:$0xff]
        %v1181 = vld [vmem:[%s256 + $0xb] sm:$0xff]
        %v1182 = vstv %s1179
        %v1183 = vmul.f32 %v1182, %v1180
        %v1184 = vmul.f32 %v1182, %v1181
        %v1185 = vadd.f32 %v1177, %v1183
        %v1186 = vadd.f32 %v1178, %v1184
        %s1187 = sld [smem:[#allocation8 + $0x47]]
        %v1188 = vstv %s1187
        %v1189 = vmul.f32 %v1188, %v1180
        %v1190 = vmul.f32 %v1188, %v1181
        %1193 = vrot.lane.b32.xlu0 %v1189, 127
        %v1194 = vpop.permute.xlu0 %1193
        %1195 = vrot.lane.b32.xlu0 %v1190, 127
        %v1196 = vpop.permute.xlu0 %1195
        %v1199 = vadd.f32 %v1185, %v1194
        %v1200 = vadd.f32 %v1186, %v1196
        %s1201 = sld [smem:[#allocation8 + $0x48]]
        %v1202 = vstv %s1201
        %v1203 = vmul.f32 %v1202, %v1180
        %v1204 = vmul.f32 %v1202, %v1181
        %1207 = vrot.lane.b32.xlu0 %v1203, 126
        %v1208 = vpop.permute.xlu0 %1207
        %1209 = vrot.lane.b32.xlu0 %v1204, 126
        %v1210 = vpop.permute.xlu0 %1209
        %v1213 = vadd.f32 %v1199, %v1208
        %v1214 = vadd.f32 %v1200, %v1210
        %s1215 = sld [smem:[#allocation8 + $0x49]]
        %v1216 = vstv %s1215
        %v1217 = vmul.f32 %v1216, %v1180
        %v1218 = vmul.f32 %v1216, %v1181
        %1221 = vrot.lane.b32.xlu0 %v1217, 125
        %v1222 = vpop.permute.xlu0 %1221
        %1223 = vrot.lane.b32.xlu0 %v1218, 125
        %v1224 = vpop.permute.xlu0 %1223
        %v1227 = vadd.f32 %v1213, %v1222
        %v1228 = vadd.f32 %v1214, %v1224
        %s1229 = sld [smem:[#allocation8 + $0x4a]]
        %v1230 = vstv %s1229
        %v1231 = vmul.f32 %v1230, %v1180
        %v1232 = vmul.f32 %v1230, %v1181
        %1235 = vrot.lane.b32.xlu0 %v1231, 124
        %v1236 = vpop.permute.xlu0 %1235
        %1237 = vrot.lane.b32.xlu0 %v1232, 124
        %v1238 = vpop.permute.xlu0 %1237
        %v1241 = vadd.f32 %v1227, %v1236
        %v1242 = vadd.f32 %v1228, %v1238
        %s1243 = sld [smem:[#allocation8 + $0x4b]]
        %v1244 = vstv %s1243
        %v1245 = vmul.f32 %v1244, %v1180
        %v1246 = vmul.f32 %v1244, %v1181
        %1249 = vrot.lane.b32.xlu0 %v1245, 123
        %v1250 = vpop.permute.xlu0 %1249
        %1251 = vrot.lane.b32.xlu0 %v1246, 123
        %v1252 = vpop.permute.xlu0 %1251
        %v1255 = vadd.f32 %v1241, %v1250
        %v1256 = vadd.f32 %v1242, %v1252
        %s1257 = sld [smem:[#allocation8 + $0x4c]]
        %v1258 = vstv %s1257
        %v1259 = vmul.f32 %v1258, %v1180
        %v1260 = vmul.f32 %v1258, %v1181
        %1263 = vrot.lane.b32.xlu0 %v1259, 122
        %v1264 = vpop.permute.xlu0 %1263
        %1265 = vrot.lane.b32.xlu0 %v1260, 122
        %v1266 = vpop.permute.xlu0 %1265
        %v1269 = vadd.f32 %v1255, %v1264
        %v1270 = vadd.f32 %v1256, %v1266
        %s1271 = sld [smem:[#allocation8 + $0x4d]]
        %v1272 = vld [vmem:[%s256 + $0x4] sm:$0xff]
        %v1273 = vld [vmem:[%s256 + $0xc] sm:$0xff]
        %v1274 = vstv %s1271
        %v1275 = vmul.f32 %v1274, %v1272
        %v1276 = vmul.f32 %v1274, %v1273
        %v1277 = vadd.f32 %v1269, %v1275
        %v1278 = vadd.f32 %v1270, %v1276
        %s1279 = sld [smem:[#allocation8 + $0x4e]]
        %v1280 = vstv %s1279
        %v1281 = vmul.f32 %v1280, %v1272
        %v1282 = vmul.f32 %v1280, %v1273
        %1285 = vrot.lane.b32.xlu0 %v1281, 127
        %v1286 = vpop.permute.xlu0 %1285
        %1287 = vrot.lane.b32.xlu0 %v1282, 127
        %v1288 = vpop.permute.xlu0 %1287
        %v1291 = vadd.f32 %v1277, %v1286
        %v1292 = vadd.f32 %v1278, %v1288
        %s1293 = sld [smem:[#allocation8 + $0x4f]]
        %v1294 = vstv %s1293
        %v1295 = vmul.f32 %v1294, %v1272
        %v1296 = vmul.f32 %v1294, %v1273
        %1299 = vrot.lane.b32.xlu0 %v1295, 126
        %v1300 = vpop.permute.xlu0 %1299
        %1301 = vrot.lane.b32.xlu0 %v1296, 126
        %v1302 = vpop.permute.xlu0 %1301
        %v1305 = vadd.f32 %v1291, %v1300
        %v1306 = vadd.f32 %v1292, %v1302
        %s1307 = sld [smem:[#allocation8 + $0x50]]
        %v1308 = vstv %s1307
        %v1309 = vmul.f32 %v1308, %v1272
        %v1310 = vmul.f32 %v1308, %v1273
        %1313 = vrot.lane.b32.xlu0 %v1309, 125
        %v1314 = vpop.permute.xlu0 %1313
        %1315 = vrot.lane.b32.xlu0 %v1310, 125
        %v1316 = vpop.permute.xlu0 %1315
        %v1319 = vadd.f32 %v1305, %v1314
        %v1320 = vadd.f32 %v1306, %v1316
        %s1321 = sld [smem:[#allocation8 + $0x51]]
        %v1322 = vstv %s1321
        %v1323 = vmul.f32 %v1322, %v1272
        %v1324 = vmul.f32 %v1322, %v1273
        %1327 = vrot.lane.b32.xlu0 %v1323, 124
        %v1328 = vpop.permute.xlu0 %1327
        %1329 = vrot.lane.b32.xlu0 %v1324, 124
        %v1330 = vpop.permute.xlu0 %1329
        %v1333 = vadd.f32 %v1319, %v1328
        %v1334 = vadd.f32 %v1320, %v1330
        %s1335 = sld [smem:[#allocation8 + $0x52]]
        %v1336 = vstv %s1335
        %v1337 = vmul.f32 %v1336, %v1272
        %v1338 = vmul.f32 %v1336, %v1273
        %1341 = vrot.lane.b32.xlu0 %v1337, 123
        %v1342 = vpop.permute.xlu0 %1341
        %1343 = vrot.lane.b32.xlu0 %v1338, 123
        %v1344 = vpop.permute.xlu0 %1343
        %v1347 = vadd.f32 %v1333, %v1342
        %v1348 = vadd.f32 %v1334, %v1344
        %s1349 = sld [smem:[#allocation8 + $0x53]]
        %v1350 = vstv %s1349
        %v1351 = vmul.f32 %v1350, %v1272
        %v1352 = vmul.f32 %v1350, %v1273
        %1355 = vrot.lane.b32.xlu0 %v1351, 122
        %v1356 = vpop.permute.xlu0 %1355
        %1357 = vrot.lane.b32.xlu0 %v1352, 122
        %v1358 = vpop.permute.xlu0 %1357
        %v1361 = vadd.f32 %v1347, %v1356
        %v1362 = vadd.f32 %v1348, %v1358
        %s1363 = sld [smem:[#allocation8 + $0x54]]
        %v1364 = vld [vmem:[%s256 + $0x5] sm:$0xff]
        %v1365 = vld [vmem:[%s256 + $0xd] sm:$0xff]
        %v1366 = vstv %s1363
        %v1367 = vmul.f32 %v1366, %v1364
        %v1368 = vmul.f32 %v1366, %v1365
        %v1369 = vadd.f32 %v1361, %v1367
        %v1370 = vadd.f32 %v1362, %v1368
        %s1371 = sld [smem:[#allocation8 + $0x55]]
        %v1372 = vstv %s1371
        %v1373 = vmul.f32 %v1372, %v1364
        %v1374 = vmul.f32 %v1372, %v1365
        %1377 = vrot.lane.b32.xlu0 %v1373, 127
        %v1378 = vpop.permute.xlu0 %1377
        %1379 = vrot.lane.b32.xlu0 %v1374, 127
        %v1380 = vpop.permute.xlu0 %1379
        %v1383 = vadd.f32 %v1369, %v1378
        %v1384 = vadd.f32 %v1370, %v1380
        %s1385 = sld [smem:[#allocation8 + $0x56]]
        %v1386 = vstv %s1385
        %v1387 = vmul.f32 %v1386, %v1364
        %v1388 = vmul.f32 %v1386, %v1365
        %1391 = vrot.lane.b32.xlu0 %v1387, 126
        %v1392 = vpop.permute.xlu0 %1391
        %1393 = vrot.lane.b32.xlu0 %v1388, 126
        %v1394 = vpop.permute.xlu0 %1393
        %v1397 = vadd.f32 %v1383, %v1392
        %v1398 = vadd.f32 %v1384, %v1394
        %s1399 = sld [smem:[#allocation8 + $0x57]]
        %v1400 = vstv %s1399
        %v1401 = vmul.f32 %v1400, %v1364
        %v1402 = vmul.f32 %v1400, %v1365
        %1405 = vrot.lane.b32.xlu0 %v1401, 125
        %v1406 = vpop.permute.xlu0 %1405
        %1407 = vrot.lane.b32.xlu0 %v1402, 125
        %v1408 = vpop.permute.xlu0 %1407
        %v1411 = vadd.f32 %v1397, %v1406
        %v1412 = vadd.f32 %v1398, %v1408
        %s1413 = sld [smem:[#allocation8 + $0x58]]
        %v1414 = vstv %s1413
        %v1415 = vmul.f32 %v1414, %v1364
        %v1416 = vmul.f32 %v1414, %v1365
        %1419 = vrot.lane.b32.xlu0 %v1415, 124
        %v1420 = vpop.permute.xlu0 %1419
        %1421 = vrot.lane.b32.xlu0 %v1416, 124
        %v1422 = vpop.permute.xlu0 %1421
        %v1425 = vadd.f32 %v1411, %v1420
        %v1426 = vadd.f32 %v1412, %v1422
        %s1427 = sld [smem:[#allocation8 + $0x59]]
        %v1428 = vstv %s1427
        %v1429 = vmul.f32 %v1428, %v1364
        %v1430 = vmul.f32 %v1428, %v1365
        %1433 = vrot.lane.b32.xlu0 %v1429, 123
        %v1434 = vpop.permute.xlu0 %1433
        %1435 = vrot.lane.b32.xlu0 %v1430, 123
        %v1436 = vpop.permute.xlu0 %1435
        %v1439 = vadd.f32 %v1425, %v1434
        %v1440 = vadd.f32 %v1426, %v1436
        %s1441 = sld [smem:[#allocation8 + $0x5a]]
        %v1442 = vstv %s1441
        %v1443 = vmul.f32 %v1442, %v1364
        %v1444 = vmul.f32 %v1442, %v1365
        %1447 = vrot.lane.b32.xlu0 %v1443, 122
        %v1448 = vpop.permute.xlu0 %1447
        %1449 = vrot.lane.b32.xlu0 %v1444, 122
        %v1450 = vpop.permute.xlu0 %1449
        %v1453 = vadd.f32 %v1439, %v1448
        %v1454 = vadd.f32 %v1440, %v1450
        %s1455 = sld [smem:[#allocation8 + $0x5b]]
        %v1456 = vld [vmem:[%s256 + $0x6] sm:$0xff]
        %v1457 = vld [vmem:[%s256 + $0xe] sm:$0xff]
        %v1458 = vstv %s1455
        %v1459 = vmul.f32 %v1458, %v1456
        %v1460 = vmul.f32 %v1458, %v1457
        %v1461 = vadd.f32 %v1453, %v1459
        %v1462 = vadd.f32 %v1454, %v1460
        %s1463 = sld [smem:[#allocation8 + $0x5c]]
        %v1464 = vstv %s1463
        %v1465 = vmul.f32 %v1464, %v1456
        %v1466 = vmul.f32 %v1464, %v1457
        %1469 = vrot.lane.b32.xlu0 %v1465, 127
        %v1470 = vpop.permute.xlu0 %1469
        %1471 = vrot.lane.b32.xlu0 %v1466, 127
        %v1472 = vpop.permute.xlu0 %1471
        %v1475 = vadd.f32 %v1461, %v1470
        %v1476 = vadd.f32 %v1462, %v1472
        %s1477 = sld [smem:[#allocation8 + $0x5d]]
        %v1478 = vstv %s1477
        %v1479 = vmul.f32 %v1478, %v1456
        %v1480 = vmul.f32 %v1478, %v1457
        %1483 = vrot.lane.b32.xlu0 %v1479, 126
        %v1484 = vpop.permute.xlu0 %1483
        %1485 = vrot.lane.b32.xlu0 %v1480, 126
        %v1486 = vpop.permute.xlu0 %1485
        %v1489 = vadd.f32 %v1475, %v1484
        %v1490 = vadd.f32 %v1476, %v1486
        %s1491 = sld [smem:[#allocation8 + $0x5e]]
        %v1492 = vstv %s1491
        %v1493 = vmul.f32 %v1492, %v1456
        %v1494 = vmul.f32 %v1492, %v1457
        %1497 = vrot.lane.b32.xlu0 %v1493, 125
        %v1498 = vpop.permute.xlu0 %1497
        %1499 = vrot.lane.b32.xlu0 %v1494, 125
        %v1500 = vpop.permute.xlu0 %1499
        %v1503 = vadd.f32 %v1489, %v1498
        %v1504 = vadd.f32 %v1490, %v1500
        %s1505 = sld [smem:[#allocation8 + $0x5f]]
        %v1506 = vstv %s1505
        %v1507 = vmul.f32 %v1506, %v1456
        %v1508 = vmul.f32 %v1506, %v1457
        %1511 = vrot.lane.b32.xlu0 %v1507, 124
        %v1512 = vpop.permute.xlu0 %1511
        %1513 = vrot.lane.b32.xlu0 %v1508, 124
        %v1514 = vpop.permute.xlu0 %1513
        %v1517 = vadd.f32 %v1503, %v1512
        %v1518 = vadd.f32 %v1504, %v1514
        %s1519 = sld [smem:[#allocation8 + $0x60]]
        %v1520 = vstv %s1519
        %v1521 = vmul.f32 %v1520, %v1456
        %v1522 = vmul.f32 %v1520, %v1457
        %1525 = vrot.lane.b32.xlu0 %v1521, 123
        %v1526 = vpop.permute.xlu0 %1525
        %1527 = vrot.lane.b32.xlu0 %v1522, 123
        %v1528 = vpop.permute.xlu0 %1527
        %v1531 = vadd.f32 %v1517, %v1526
        %v1532 = vadd.f32 %v1518, %v1528
        %s1533 = sld [smem:[#allocation8 + $0x61]]
        %v1534 = vstv %s1533
        %v1535 = vmul.f32 %v1534, %v1456
        %v1536 = vmul.f32 %v1534, %v1457
        %1539 = vrot.lane.b32.xlu0 %v1535, 122
        %v1540 = vpop.permute.xlu0 %1539
        %1541 = vrot.lane.b32.xlu0 %v1536, 122
        %v1542 = vpop.permute.xlu0 %1541
        %v1545 = vadd.f32 %v1531, %v1540
        %v1546 = vadd.f32 %v1532, %v1542
        %s1547 = sld [smem:[#allocation3]]
        %v1548 = vstv %s1547
        %v1549 = vadd.f32 %v1545, %v1548
        %v1550 = vadd.f32 %v1546, %v1548
        %v1551 = vsub.f32 0.0, %v1549
        %v1552 = vsub.f32 0.0, %v1550
        %v1553 = vmul.f32 %v1551, 1.442695
        %v1554 = vpow.pop %v1553
        %v1555 = vmul.f32 %v1552, 1.442695
        %v1556 = vpow.pop %v1555
        %v1557 = vadd.f32 %v1554, 1.0
        %v1558 = vadd.f32 %v1556, 1.0
        %v1559 = vrcp.pop %v1557
        %v1560 = vmul.f32 1.0, %v1559
        %v1561 = vrcp.pop %v1558
        %v1562 = vmul.f32 1.0, %v1561
        %vm1563 = vcmask 130048
        %1564 = vst.msk [vmem:[%s203] sm:$0xff] %vm1563, %v1560
        %1565 = vst.msk [vmem:[%s203 + $0x8] sm:$0xff] %vm1563, %v1562
        %s1566 = sand.u32 %s98, 1
        %s1567 = scalar_lea.sflag [#allocation6], %s1566
        %s1568 = sand.u32 %s98, 1
        %s1569 = smul.addr %s1568, 16
        %s1570 = scalar_lea.vmem [#allocation9], %s1569
        // Predicated region
        $region41: #{tpu_custom_call.1} parent=31 // pred_check
          %p1571 = pneg %p108
        $region42: #{tpu_custom_call.1} parent=31 // pred_check_branch
          %1573 = sbr.rel (%p1571) target = $region44
        $region43: #{tpu_custom_call.1} parent=31 // pred_region
          %s1575 = ssub.s32 256, 256
          %1576 = vsyncadd %s1567, %s1575
          %s1577 = smul.addr %s22, 2
          %s1578 = smul.addr %s1577, 128
          %s1579 = scalar_lea.hbm %s3, %s1578
          %s1580 = sshll.u32 %s1570, 4
          %s1581 = int_to_ptr.vmem [resolvable:$true] %s1580
          %1586 = dma.vmem_to_hbm [thread:$0]  %s1581, 256, %s1579, %s1567, 128, 128, 8
        $region44: #{tpu_custom_call.1} parent=31 // pred_fallthru
          _
      $region32: #{tpu_custom_call.1} parent=5 // pred_fallthru
        _
      %p1587 = scmp.le.s32.totalorder 2, %s17
      // Predicated region
      $region45: #{tpu_custom_call.1} parent=5 // pred_check
        %p1588 = pneg %p1587
      $region46: #{tpu_custom_call.1} parent=5 // pred_check_branch
        %1590 = sbr.rel (%p1588) target = $region48
      $region47: #{tpu_custom_call.1} parent=5 // pred_region
        %s1591 = ssub.s32 %s17, 2
        // Predicated region
        $region49: #{tpu_custom_call.1} parent=47 // pred_check
          %p1592 = pneg %p114
        $region50: #{tpu_custom_call.1} parent=47 // pred_check_branch
          %1594 = sbr.rel (%p1592) target = $region52
        $region51: #{tpu_custom_call.1} parent=47 // pred_region
          %s1595 = sand.u32 %s99, 1
          %s1596 = scalar_lea.sflag [#allocation6], %s1595
          %s1597 = sand.u32 %s99, 1
          %s1598 = smul.addr %s1597, 16
          %s1599 = scalar_lea.vmem [#allocation9], %s1598
          %1600 = dma.done %s1596, 256
        $region52: #{tpu_custom_call.1} parent=47 // pred_fallthru
          _
      $region48: #{tpu_custom_call.1} parent=5 // pred_fallthru
        _
    $region6: #{tpu_custom_call.1} parent=1 // loop_footer
      %s21 = sadd.s32 1, %s17
    $region7: #{tpu_custom_call.1} parent=1 // loop_footer_branch
      %16 = sbr.rel target = $region3
    $region8: #{tpu_custom_call.1} parent=1 // loop_exit
      _
    %1601 = vsyncpa [#allocation5], 1
    %s1602 = scalar_lea.sflag [#allocation5], 1
    %1603 = vsyncpa %s1602, 1
    %1604 = vsyncpa [#allocation6], 1
    %s1605 = scalar_lea.sflag [#allocation6], 1
    %1606 = vsyncpa %s1605, 1
    %1607 = vsyncpa [#allocation7], 1
    %s1608 = scalar_lea.sflag [#allocation7], 1
    %1609 = vsyncpa %s1608, 1

</llo_original>
